<compile_context>
chip_gen: v6e
topology: v6e:2x2x1
jax: 0.10.0
libtpu: 0.0.40
codegen_flags: <defaults>
</compile_context>

<pallas_src>
import math

import jax
import jax.numpy as jnp
from jax.experimental import pallas as pl
from jax.experimental.pallas import tpu as pltpu


# ------------------------------- Pallas kernel ------------------------------ #

def _ffn_kernel(x_ref, w1_ref, b1_ref, w2_ref, b2_ref, o_ref):
    # o = relu(x @ w1 + b1) @ w2 + b2     (dropout p=0.0 -> identity)
    # bf16 on the MXU, f32 accumulation; bias add / ReLU in f32.
    x = x_ref[...]
    h = jnp.dot(x.astype(jnp.bfloat16), w1_ref[...],
                preferred_element_type=jnp.float32) + b1_ref[...]
    h = jnp.maximum(h, 0.0)
    o_ref[...] = (jnp.dot(h.astype(jnp.bfloat16), w2_ref[...],
                          preferred_element_type=jnp.float32) + b2_ref[...])


# ------------------------------ Kernel wrapper ------------------------------ #

def pallas_feed_forward(x, w1, b1, w2, b2, *, tm=256):
    """FeedForward over the last dim of x.  x: (..., d), w1: (d, hid), w2: (hid, d)."""
    orig_shape = x.shape
    d = orig_shape[-1]
    hid = w1.shape[1]

    x2d = x.reshape(-1, d).astype(jnp.float32)
    M = x2d.shape[0]

    # Row tile: multiple of 8 sublanes, capped at `tm`; pad M so the grid divides evenly.
    Mp = -(-M // 8) * 8
    blk_m = min(tm, Mp)
    Mp = -(-Mp // blk_m) * blk_m
    if Mp != M:
        x2d = jnp.pad(x2d, ((0, Mp - M), (0, 0)))

    # bf16 weights (halves HBM/VMEM traffic, feeds the MXU's fast path);
    # biases stay f32 for the VPU add.
    w1b = w1.astype(jnp.bfloat16)
    w2b = w2.astype(jnp.bfloat16)
    b1f = b1.reshape(1, hid).astype(jnp.float32)
    b2f = b2.reshape(1, d).astype(jnp.float32)

    out = pl.pallas_call(
        _ffn_kernel,
        out_shape=jax.ShapeDtypeStruct((Mp, d), jnp.float32),
        grid=(Mp // blk_m,),
        in_specs=[
            pl.BlockSpec((blk_m, d), lambda i: (i, 0)),   # x tile   (pipelined)
            pl.BlockSpec((d, hid), lambda i: (0, 0)),     # w1       (resident)
            pl.BlockSpec((1, hid), lambda i: (0, 0)),     # b1       (resident)
            pl.BlockSpec((hid, d), lambda i: (0, 0)),     # w2       (resident)
            pl.BlockSpec((1, d), lambda i: (0, 0)),       # b2       (resident)
        ],
        out_specs=pl.BlockSpec((blk_m, d), lambda i: (i, 0)),
        compiler_params=pltpu.CompilerParams(
            dimension_semantics=("parallel",),
            vmem_limit_bytes=48 * 1024 * 1024,
        ),
    )(x2d, w1b, b1f, w2b, b2f)

    if Mp != M:
        out = out[:M]
    return out.reshape(orig_shape)


# ----------------------------------- Main ----------------------------------- #

if __name__ == "__main__":
    # Small shapes consistent with the module: x is (batch, seq, d).
    B, L, d, hid = 4, 128, 128, 512

    key = jax.random.PRNGKey(0)
    kx, k1, k2, k3, k4 = jax.random.split(key, 5)

    x = jax.random.normal(kx, (B, L, d), jnp.float32)

    # PyTorch nn.Linear-style init: U(-1/sqrt(fan_in), 1/sqrt(fan_in)).
    bound1 = 1.0 / math.sqrt(d)
    w1 = jax.random.uniform(k1, (d, hid), jnp.float32, -bound1, bound1)
    b1 = jax.random.uniform(k2, (hid,), jnp.float32, -bound1, bound1)
    bound2 = 1.0 / math.sqrt(hid)
    w2 = jax.random.uniform(k3, (hid, d), jnp.float32, -bound2, bound2)
    b2 = jax.random.uniform(k4, (d,), jnp.float32, -bound2, bound2)

    fwd = jax.jit(pallas_feed_forward)
    out = jax.block_until_ready(fwd(x, w1, b1, w2, b2))

    # Pure-JAX f32 reference (bf16 MXU path -> loose relative tolerance).
    ref = (jnp.maximum(x.reshape(-1, d) @ w1 + b1, 0.0) @ w2 + b2).reshape(B, L, d)

    assert out.shape == (B, L, d), out.shape
    assert out.dtype == jnp.float32
    assert bool(jnp.all(jnp.isfinite(out)))
    rel_err = float(jnp.max(jnp.abs(out - ref)) / (jnp.max(jnp.abs(ref)) + 1e-6))
    assert rel_err < 5e-2, rel_err
    print("KERNEL_OK")
</pallas_src>

<mosaic_0001>
module attributes {stable_mosaic.version = 11 : i64} {
  func.func @_ffn_kernel(%arg0: i32, %arg1: memref<256x128xf32, #tpu.memory_space<vmem>>, %arg2: memref<128x512xbf16, #tpu.memory_space<vmem>>, %arg3: memref<1x512xf32, #tpu.memory_space<vmem>>, %arg4: memref<512x128xbf16, #tpu.memory_space<vmem>>, %arg5: memref<1x128xf32, #tpu.memory_space<vmem>>, %arg6: memref<256x128xf32, #tpu.memory_space<vmem>>) attributes {dimension_semantics = [#tpu.dimension_semantics<parallel>], iteration_bounds = array<i64: 2>, scalar_prefetch = 0 : i64, scratch_operands = 0 : i64, tpu.core_type = #tpu.core_type<tc>, window_params = [{transform_indices = @transform_0, window_bounds = array<i64: 256, 128>}, {pipeline_mode = #tpu.pipeline_mode<synchronous>, transform_indices = @transform_1, window_bounds = array<i64: 128, 512>}, {pipeline_mode = #tpu.pipeline_mode<synchronous>, transform_indices = @transform_2, window_bounds = array<i64: 1, 512>}, {pipeline_mode = #tpu.pipeline_mode<synchronous>, transform_indices = @transform_3, window_bounds = array<i64: 512, 128>}, {pipeline_mode = #tpu.pipeline_mode<synchronous>, transform_indices = @transform_4, window_bounds = array<i64: 1, 128>}, {transform_indices = @transform_5, window_bounds = array<i64: 256, 128>}]} {
    %c0 = arith.constant 0 : index
    %c0_0 = arith.constant 0 : index
    %0 = vector.load %arg1[%c0, %c0_0] : memref<256x128xf32, #tpu.memory_space<vmem>>, vector<256x128xf32>
    %1 = arith.truncf %0 : vector<256x128xf32> to vector<256x128xbf16>
    %c0_1 = arith.constant 0 : index
    %c0_2 = arith.constant 0 : index
    %2 = vector.load %arg2[%c0_1, %c0_2] : memref<128x512xbf16, #tpu.memory_space<vmem>>, vector<128x512xbf16>
    %cst = arith.constant dense<0.000000e+00> : vector<256x512xf32>
    %3 = tpu.matmul %1, %2, %cst {dimension_numbers = #tpu.dot_dimension_numbers<[1], [0], [0], [1], [0, 0, 1, 1], [], []>} : vector<256x128xbf16>, vector<128x512xbf16>, vector<256x512xf32> -> vector<256x512xf32>
    %c0_3 = arith.constant 0 : index
    %c0_4 = arith.constant 0 : index
    %4 = vector.load %arg3[%c0_3, %c0_4] : memref<1x512xf32, #tpu.memory_space<vmem>>, vector<1x512xf32>
    %5 = vector.broadcast %4 : vector<1x512xf32> to vector<256x512xf32>
    %6 = arith.addf %3, %5 : vector<256x512xf32>
    %cst_5 = arith.constant 0.000000e+00 : f32
    %7 = vector.broadcast %cst_5 : f32 to vector<256x512xf32>
    %8 = arith.maximumf %6, %7 : vector<256x512xf32>
    %9 = arith.truncf %8 : vector<256x512xf32> to vector<256x512xbf16>
    %c0_6 = arith.constant 0 : index
    %c0_7 = arith.constant 0 : index
    %10 = vector.load %arg4[%c0_6, %c0_7] : memref<512x128xbf16, #tpu.memory_space<vmem>>, vector<512x128xbf16>
    %cst_8 = arith.constant dense<0.000000e+00> : vector<256x128xf32>
    %11 = tpu.matmul %9, %10, %cst_8 {dimension_numbers = #tpu.dot_dimension_numbers<[1], [0], [0], [1], [0, 0, 1, 1], [], []>} : vector<256x512xbf16>, vector<512x128xbf16>, vector<256x128xf32> -> vector<256x128xf32>
    %c0_9 = arith.constant 0 : index
    %c0_10 = arith.constant 0 : index
    %12 = vector.load %arg5[%c0_9, %c0_10] : memref<1x128xf32, #tpu.memory_space<vmem>>, vector<1x128xf32>
    %13 = vector.broadcast %12 : vector<1x128xf32> to vector<256x128xf32>
    %14 = arith.addf %11, %13 : vector<256x128xf32>
    %c0_11 = arith.constant 0 : index
    %c0_12 = arith.constant 0 : index
    %15 = vector.load %arg6[%c0_11, %c0_12] : memref<256x128xf32, #tpu.memory_space<vmem>>, vector<256x128xf32>
    tpu.vector_store %arg6[%c0_11, %c0_12], %14 {strides = array<i32>} : memref<256x128xf32, #tpu.memory_space<vmem>>, vector<256x128xf32>,
    return
  }
  func.func @transform_0(%arg0: i32) -> (i32, i32) {
    %c0_i32 = arith.constant 0 : i32
    %c0_i32_0 = arith.constant 0 : i32
    return %arg0, %c0_i32 : i32, i32
  }
  func.func @transform_1(%arg0: i32) -> (i32, i32) {
    %c0_i32 = arith.constant 0 : i32
    %c0_i32_0 = arith.constant 0 : i32
    %c0_i32_1 = arith.constant 0 : i32
    return %c0_i32, %c0_i32_0 : i32, i32
  }
  func.func @transform_2(%arg0: i32) -> (i32, i32) {
    %c0_i32 = arith.constant 0 : i32
    %c0_i32_0 = arith.constant 0 : i32
    %c0_i32_1 = arith.constant 0 : i32
    return %c0_i32, %c0_i32_0 : i32, i32
  }
  func.func @transform_3(%arg0: i32) -> (i32, i32) {
    %c0_i32 = arith.constant 0 : i32
    %c0_i32_0 = arith.constant 0 : i32
    %c0_i32_1 = arith.constant 0 : i32
    return %c0_i32, %c0_i32_0 : i32, i32
  }
  func.func @transform_4(%arg0: i32) -> (i32, i32) {
    %c0_i32 = arith.constant 0 : i32
    %c0_i32_0 = arith.constant 0 : i32
    %c0_i32_1 = arith.constant 0 : i32
    return %c0_i32, %c0_i32_0 : i32, i32
  }
  func.func @transform_5(%arg0: i32) -> (i32, i32) {
    %c0_i32 = arith.constant 0 : i32
    %c0_i32_0 = arith.constant 0 : i32
    return %arg0, %c0_i32 : i32, i32
  }
}

</mosaic_0001>

<llo_original>
// kernel: pallas_feed_forward.1
$region0: #{pallas_feed_forward.1}
  #allocation0 [shape = 'u32[]', space=smem, size = 0x4, offset = 0x4, fixed_abs, tag = 'smem constant byte address 0x4 - core index']
  #allocation1 [shape = 'u32[144,128]{1,0:T(1,128)}', space=vmem, size = 0x12000, scoped, tag = 'internal scratch']
  %s0 = inlined_call_operand.vmem [shape: f32[512,128], index: 0, kind: input, shape index: {}]
  %s1 = inlined_call_operand.vmem [shape: bf16[128,512], index: 1, kind: input, shape index: {}]
  %s2 = inlined_call_operand.vmem [shape: f32[1,512], index: 2, kind: input, shape index: {}]
  %s3 = inlined_call_operand.vmem [shape: bf16[512,128], index: 3, kind: input, shape index: {}]
  %s4 = inlined_call_operand.vmem [shape: f32[1,128], index: 4, kind: input, shape index: {}]
  %s5 = inlined_call_operand.hbm [shape: f32[512,128], index: 5, kind: output, shape index: {}]
  %s6 = sld [smem:[#allocation0]]
  $region53: #{pallas_feed_forward.1} parent=0
    _
  %s8 = ssub.s32 1, %s6
  %s9 = scalar_select 0, %s8, %s6
  $region1: #{pallas_feed_forward.1} parent=0
    #allocation2 [shape = 'u8[262144]{0}', space=vmem, size = 0x40000, scoped, tag = 'output window, operand 0']
    #allocation3 [shape = 's32[2]{0}', space=sflag, size = 0x8, scoped, tag = 'scoped memory for pallas_feed_forward.1']
    %10 = vsyncpa [#allocation3], 0
    %s11 = scalar_lea.sflag [#allocation3], 1
    %12 = vsyncpa %s11, 0
    loop: start=0, step=1, limit=4
    $region2: #{pallas_feed_forward.1} parent=1 // loop_pre_header
      _
    $region3: #{pallas_feed_forward.1} parent=1 // loop_header
      %s14 = sphi 0, %s18
      %p15 = scmp.ge.s32.totalorder %s14, 4
      %s24 = sphi 0, %s26
      %s27 = sphi 0, %s24
      %s28 = sphi 0, %s27
      %s44 = sphi 0, %s28
      %s48 = sphi 0, %s48
      %s50 = sphi 0, %s48
      %s51 = sphi 0, %s50
      %s65 = sphi 0, %s51
      %s69 = sphi 0, %s69
      %s71 = sphi 0, %s69
      %s72 = sphi 0, %s71
      %s86 = sphi 0, %s72
      %s90 = sphi 0, %s90
      %s92 = sphi 0, %s90
      %s93 = sphi 0, %s92
      %s107 = sphi 0, %s93
      %s111 = sphi 0, %s111
      %s113 = sphi 0, %s111
      %s114 = sphi 0, %s113
      %s128 = sphi 0, %s114
      %s134 = sphi 0, %s136
      %s137 = sphi 0, %s134
      %s138 = sphi 0, %s137
      %s154 = sphi 0, %s138
    $region4: #{pallas_feed_forward.1} parent=1 // loop_header_branch
      %17 = sbr.rel (%p15) target = $region8
    $region5: #{pallas_feed_forward.1} parent=1 // loop_body
      %s19 = ssub.s32 %s14, 1
      %s20 = ssub.s32 %s14, 2
      %s21 = sadd.s32 %s14, 1
      %s22 = ssub.s32 %s14, %s21
      %p23 = scmp.eq.s32.totalorder %s22, 0
      %s25 = sadd.s32 %s24, 1
      %s26 = scalar_select %p23, %s24, %s25
      %p29 = pneg %p23
      %p30 = scmp.eq.s32.totalorder %s14, 1
      %p31 = por %p29, %p30
      %p32 = scmp.ne.s32.totalorder %s24, %s27
      %p33 = scmp.eq.s32.totalorder %s14, 0
      %p34 = por %p32, %p33
      %p35 = scmp.ne.s32.totalorder %s24, %s27
      %p36 = scmp.eq.s32.totalorder %s19, 1
      %p37 = por %p35, %p36
      %p38 = scmp.ne.s32.totalorder %s27, %s28
      %p39 = scmp.eq.s32.totalorder %s19, 0
      %p40 = por %p38, %p39
      %p41 = scmp.ne.s32.totalorder %s27, %s28
      %p42 = scmp.eq.s32.totalorder %s20, 1
      %p43 = por %p41, %p42
      %p45 = scmp.ne.s32.totalorder %s28, %s44
      %p46 = scmp.eq.s32.totalorder %s20, 0
      %p47 = por %p45, %p46
      %s49 = sadd.s32 %s48, 1
      %p52 = scmp.eq.s32.totalorder %s14, 1
      %p53 = scmp.ne.s32.totalorder %s48, %s50
      %p54 = scmp.eq.s32.totalorder %s14, 0
      %p55 = por %p53, %p54
      %p56 = scmp.ne.s32.totalorder %s48, %s50
      %p57 = scmp.eq.s32.totalorder %s19, 1
      %p58 = por %p56, %p57
      %p59 = scmp.ne.s32.totalorder %s50, %s51
      %p60 = scmp.eq.s32.totalorder %s19, 0
      %p61 = por %p59, %p60
      %p62 = scmp.ne.s32.totalorder %s50, %s51
      %p63 = scmp.eq.s32.totalorder %s20, 1
      %p64 = por %p62, %p63
      %p66 = scmp.ne.s32.totalorder %s51, %s65
      %p67 = scmp.eq.s32.totalorder %s20, 0
      %p68 = por %p66, %p67
      %s70 = sadd.s32 %s69, 1
      %p73 = scmp.eq.s32.totalorder %s14, 1
      %p74 = scmp.ne.s32.totalorder %s69, %s71
      %p75 = scmp.eq.s32.totalorder %s14, 0
      %p76 = por %p74, %p75
      %p77 = scmp.ne.s32.totalorder %s69, %s71
      %p78 = scmp.eq.s32.totalorder %s19, 1
      %p79 = por %p77, %p78
      %p80 = scmp.ne.s32.totalorder %s71, %s72
      %p81 = scmp.eq.s32.totalorder %s19, 0
      %p82 = por %p80, %p81
      %p83 = scmp.ne.s32.totalorder %s71, %s72
      %p84 = scmp.eq.s32.totalorder %s20, 1
      %p85 = por %p83, %p84
      %p87 = scmp.ne.s32.totalorder %s72, %s86
      %p88 = scmp.eq.s32.totalorder %s20, 0
      %p89 = por %p87, %p88
      %s91 = sadd.s32 %s90, 1
      %p94 = scmp.eq.s32.totalorder %s14, 1
      %p95 = scmp.ne.s32.totalorder %s90, %s92
      %p96 = scmp.eq.s32.totalorder %s14, 0
      %p97 = por %p95, %p96
      %p98 = scmp.ne.s32.totalorder %s90, %s92
      %p99 = scmp.eq.s32.totalorder %s19, 1
      %p100 = por %p98, %p99
      %p101 = scmp.ne.s32.totalorder %s92, %s93
      %p102 = scmp.eq.s32.totalorder %s19, 0
      %p103 = por %p101, %p102
      %p104 = scmp.ne.s32.totalorder %s92, %s93
      %p105 = scmp.eq.s32.totalorder %s20, 1
      %p106 = por %p104, %p105
      %p108 = scmp.ne.s32.totalorder %s93, %s107
      %p109 = scmp.eq.s32.totalorder %s20, 0
      %p110 = por %p108, %p109
      %s112 = sadd.s32 %s111, 1
      %p115 = scmp.eq.s32.totalorder %s14, 1
      %p116 = scmp.ne.s32.totalorder %s111, %s113
      %p117 = scmp.eq.s32.totalorder %s14, 0
      %p118 = por %p116, %p117
      %p119 = scmp.ne.s32.totalorder %s111, %s113
      %p120 = scmp.eq.s32.totalorder %s19, 1
      %p121 = por %p119, %p120
      %p122 = scmp.ne.s32.totalorder %s113, %s114
      %p123 = scmp.eq.s32.totalorder %s19, 0
      %p124 = por %p122, %p123
      %p125 = scmp.ne.s32.totalorder %s113, %s114
      %p126 = scmp.eq.s32.totalorder %s20, 1
      %p127 = por %p125, %p126
      %p129 = scmp.ne.s32.totalorder %s114, %s128
      %p130 = scmp.eq.s32.totalorder %s20, 0
      %p131 = por %p129, %p130
      %s132 = ssub.s32 %s14, %s21
      %p133 = scmp.eq.s32.totalorder %s132, 0
      %s135 = sadd.s32 %s134, 1
      %s136 = scalar_select %p133, %s134, %s135
      %p139 = pneg %p133
      %p140 = scmp.eq.s32.totalorder %s14, 1
      %p141 = por %p139, %p140
      %p142 = scmp.ne.s32.totalorder %s134, %s137
      %p143 = scmp.eq.s32.totalorder %s14, 0
      %p144 = por %p142, %p143
      %p145 = scmp.ne.s32.totalorder %s134, %s137
      %p146 = scmp.eq.s32.totalorder %s19, 1
      %p147 = por %p145, %p146
      %p148 = scmp.ne.s32.totalorder %s137, %s138
      %p149 = scmp.eq.s32.totalorder %s19, 0
      %p150 = por %p148, %p149
      %p151 = scmp.ne.s32.totalorder %s137, %s138
      %p152 = scmp.eq.s32.totalorder %s20, 1
      %p153 = por %p151, %p152
      %p155 = scmp.ne.s32.totalorder %s138, %s154
      %p156 = scmp.eq.s32.totalorder %s20, 0
      %p157 = por %p155, %p156
      %p158 = scmp.le.s32.totalorder 1, %s14
      %p159 = scmp.lt.s32.totalorder %s14, 3
      %p160 = pnand %p158, %p159
      %p161 = pneg %p160
      // Predicated region
      $region9: #{pallas_feed_forward.1} parent=5 // pred_check
        _
      $region10: #{pallas_feed_forward.1} parent=5 // pred_check_branch
        %163 = sbr.rel (%p160) target = $region12
      $region11: #{pallas_feed_forward.1} parent=5 // pred_region
        %s164 = ssub.s32 %s14, 1
        // Predicated region
        $region13: #{pallas_feed_forward.1} parent=11 // pred_check
          %p165 = pneg %p61
        $region14: #{pallas_feed_forward.1} parent=11 // pred_check_branch
          %167 = sbr.rel (%p165) target = $region16
        $region15: #{pallas_feed_forward.1} parent=11 // pred_region
          _
        $region16: #{pallas_feed_forward.1} parent=11 // pred_fallthru
          _
        // Predicated region
        $region17: #{pallas_feed_forward.1} parent=11 // pred_check
          %p168 = pneg %p82
        $region18: #{pallas_feed_forward.1} parent=11 // pred_check_branch
          %170 = sbr.rel (%p168) target = $region20
        $region19: #{pallas_feed_forward.1} parent=11 // pred_region
          _
        $region20: #{pallas_feed_forward.1} parent=11 // pred_fallthru
          _
        // Predicated region
        $region21: #{pallas_feed_forward.1} parent=11 // pred_check
          %p171 = pneg %p103
        $region22: #{pallas_feed_forward.1} parent=11 // pred_check_branch
          %173 = sbr.rel (%p171) target = $region24
        $region23: #{pallas_feed_forward.1} parent=11 // pred_region
          _
        $region24: #{pallas_feed_forward.1} parent=11 // pred_fallthru
          _
        // Predicated region
        $region25: #{pallas_feed_forward.1} parent=11 // pred_check
          %p174 = pneg %p124
        $region26: #{pallas_feed_forward.1} parent=11 // pred_check_branch
          %176 = sbr.rel (%p174) target = $region28
        $region27: #{pallas_feed_forward.1} parent=11 // pred_region
          _
        $region28: #{pallas_feed_forward.1} parent=11 // pred_fallthru
          _
      $region12: #{pallas_feed_forward.1} parent=5 // pred_fallthru
        _
      %p177 = scmp.lt.s32.totalorder %s14, 2
      // Predicated region
      $region29: #{pallas_feed_forward.1} parent=5 // pred_check
        %p178 = pneg %p177
      $region30: #{pallas_feed_forward.1} parent=5 // pred_check_branch
        %180 = sbr.rel (%p178) target = $region32
      $region31: #{pallas_feed_forward.1} parent=5 // pred_region
        // Predicated region
        $region33: #{pallas_feed_forward.1} parent=31 // pred_check
          %p181 = pneg %p34
        $region34: #{pallas_feed_forward.1} parent=31 // pred_check_branch
          %183 = sbr.rel (%p181) target = $region36
        $region35: #{pallas_feed_forward.1} parent=31 // pred_region
          %s184 = smul.u32 32, %s14
          %p185 = scmp.lt.s32.totalorder %s184, 63
          %s186 = scalar_select %p185, %s184, 63
          %s187 = smul.addr %s186, 8
          %s188 = scalar_lea.vmem %s0, %s187
          %s189 = smul.u32 32, %s14
        $region36: #{pallas_feed_forward.1} parent=31 // pred_fallthru
          _
      $region32: #{pallas_feed_forward.1} parent=5 // pred_fallthru
        _
      %p190 = scmp.le.s32.totalorder 1, %s14
      %p191 = scmp.lt.s32.totalorder %s14, 3
      %p192 = pnand %p190, %p191
      %p193 = pneg %p192
      // Predicated region
      $region37: #{pallas_feed_forward.1} parent=5 // pred_check
        _
      $region38: #{pallas_feed_forward.1} parent=5 // pred_check_branch
        %195 = sbr.rel (%p192) target = $region40
      $region39: #{pallas_feed_forward.1} parent=5 // pred_region
        %s196 = ssub.s32 %s14, 1
        %s197 = smul.u32 32, %s19
        %p198 = scmp.lt.s32.totalorder %s197, 63
        %s199 = scalar_select %p198, %s197, 63
        %s200 = smul.addr %s199, 8
        %s201 = scalar_lea.vmem %s0, %s200
        %p202 = pneg %p40
        %p203 = pneg %p37
        %p204 = pneg %p61
        %p205 = pneg %p58
        %p206 = pneg %p82
        %p207 = pneg %p79
        %p208 = pneg %p103
        %p209 = pneg %p100
        %p210 = pneg %p124
        %p211 = pneg %p121
        %p212 = pneg %p150
        %p213 = pneg %p147
        %s214 = sand.u32 %s137, 1
        %s215 = scalar_lea.sflag [#allocation3], %s214
        %s216 = sand.u32 %s137, 1
        %s217 = smul.addr %s216, 256
        %s218 = scalar_lea.vmem [#allocation2], %s217
        %s219 = smul.u32 32, %s19
        %p220 = scmp.lt.s32.totalorder %s219, 63
        %s221 = scalar_select %p220, %s219, 63
        %s222 = smul.addr %s221, 8
        %s223 = scalar_lea.vmem %s0, %s222
        %s224 = smul.u32 32, %s19
        %s225 = smul.u32 32, %s19
        %v227 = vld [vmem:[%s223] sm:$0xff]
        %v228 = vld [vmem:[%s223 + $0x8] sm:$0xff]
        %v229 = vld [vmem:[%s223 + $0x10] sm:$0xff]
        %v230 = vld [vmem:[%s223 + $0x18] sm:$0xff]
        %v231 = vld [vmem:[%s223 + $0x20] sm:$0xff]
        %v232 = vld [vmem:[%s223 + $0x28] sm:$0xff]
        %v233 = vld [vmem:[%s223 + $0x30] sm:$0xff]
        %v234 = vld [vmem:[%s223 + $0x38] sm:$0xff]
        %v235 = vld [vmem:[%s223 + $0x40] sm:$0xff]
        %v236 = vld [vmem:[%s223 + $0x48] sm:$0xff]
        %v237 = vld [vmem:[%s223 + $0x50] sm:$0xff]
        %v238 = vld [vmem:[%s223 + $0x58] sm:$0xff]
        %v239 = vld [vmem:[%s223 + $0x60] sm:$0xff]
        %v240 = vld [vmem:[%s223 + $0x68] sm:$0xff]
        %v241 = vld [vmem:[%s223 + $0x70] sm:$0xff]
        %v242 = vld [vmem:[%s223 + $0x78] sm:$0xff]
        %v243 = vld [vmem:[%s223 + $0x80] sm:$0xff]
        %v244 = vld [vmem:[%s223 + $0x88] sm:$0xff]
        %v245 = vld [vmem:[%s223 + $0x90] sm:$0xff]
        %v246 = vld [vmem:[%s223 + $0x98] sm:$0xff]
        %v247 = vld [vmem:[%s223 + $0xa0] sm:$0xff]
        %v248 = vld [vmem:[%s223 + $0xa8] sm:$0xff]
        %v249 = vld [vmem:[%s223 + $0xb0] sm:$0xff]
        %v250 = vld [vmem:[%s223 + $0xb8] sm:$0xff]
        %v251 = vld [vmem:[%s223 + $0xc0] sm:$0xff]
        %v252 = vld [vmem:[%s223 + $0xc8] sm:$0xff]
        %v253 = vld [vmem:[%s223 + $0xd0] sm:$0xff]
        %v254 = vld [vmem:[%s223 + $0xd8] sm:$0xff]
        %v255 = vld [vmem:[%s223 + $0xe0] sm:$0xff]
        %v256 = vld [vmem:[%s223 + $0xe8] sm:$0xff]
        %v257 = vld [vmem:[%s223 + $0xf0] sm:$0xff]
        %v258 = vld [vmem:[%s223 + $0xf8] sm:$0xff]
        %v259 = vpack.c.bf16 %v228, %v227
        %v260 = vpack.c.bf16 %v230, %v229
        %v261 = vpack.c.bf16 %v232, %v231
        %v262 = vpack.c.bf16 %v234, %v233
        %v263 = vpack.c.bf16 %v236, %v235
        %v264 = vpack.c.bf16 %v238, %v237
        %v265 = vpack.c.bf16 %v240, %v239
        %v266 = vpack.c.bf16 %v242, %v241
        %v267 = vpack.c.bf16 %v244, %v243
        %v268 = vpack.c.bf16 %v246, %v245
        %v269 = vpack.c.bf16 %v248, %v247
        %v270 = vpack.c.bf16 %v250, %v249
        %v271 = vpack.c.bf16 %v252, %v251
        %v272 = vpack.c.bf16 %v254, %v253
        %v273 = vpack.c.bf16 %v256, %v255
        %v274 = vpack.c.bf16 %v258, %v257
        %v275 = vld [vmem:[%s1] sm:$0xff]
        %v276 = vld [vmem:[%s1 + $0x8] sm:$0xff]
        %v277 = vld [vmem:[%s1 + $0x10] sm:$0xff]
        %v278 = vld [vmem:[%s1 + $0x18] sm:$0xff]
        %v279 = vld [vmem:[%s1 + $0x20] sm:$0xff]
        %v280 = vld [vmem:[%s1 + $0x28] sm:$0xff]
        %v281 = vld [vmem:[%s1 + $0x30] sm:$0xff]
        %v282 = vld [vmem:[%s1 + $0x38] sm:$0xff]
        %v283 = vld [vmem:[%s1 + $0x40] sm:$0xff]
        %v284 = vld [vmem:[%s1 + $0x48] sm:$0xff]
        %v285 = vld [vmem:[%s1 + $0x50] sm:$0xff]
        %v286 = vld [vmem:[%s1 + $0x58] sm:$0xff]
        %v287 = vld [vmem:[%s1 + $0x60] sm:$0xff]
        %v288 = vld [vmem:[%s1 + $0x68] sm:$0xff]
        %v289 = vld [vmem:[%s1 + $0x70] sm:$0xff]
        %v290 = vld [vmem:[%s1 + $0x78] sm:$0xff]
        %v291 = vld [vmem:[%s1 + $0x80] sm:$0xff]
        %v292 = vld [vmem:[%s1 + $0x88] sm:$0xff]
        %v293 = vld [vmem:[%s1 + $0x90] sm:$0xff]
        %v294 = vld [vmem:[%s1 + $0x98] sm:$0xff]
        %v295 = vld [vmem:[%s1 + $0xa0] sm:$0xff]
        %v296 = vld [vmem:[%s1 + $0xa8] sm:$0xff]
        %v297 = vld [vmem:[%s1 + $0xb0] sm:$0xff]
        %v298 = vld [vmem:[%s1 + $0xb8] sm:$0xff]
        %v299 = vld [vmem:[%s1 + $0xc0] sm:$0xff]
        %v300 = vld [vmem:[%s1 + $0xc8] sm:$0xff]
        %v301 = vld [vmem:[%s1 + $0xd0] sm:$0xff]
        %v302 = vld [vmem:[%s1 + $0xd8] sm:$0xff]
        %v303 = vld [vmem:[%s1 + $0xe0] sm:$0xff]
        %v304 = vld [vmem:[%s1 + $0xe8] sm:$0xff]
        %v305 = vld [vmem:[%s1 + $0xf0] sm:$0xff]
        %v306 = vld [vmem:[%s1 + $0xf8] sm:$0xff]
        %v307 = vld [vmem:[%s2] sm:$0xf]
        %v309 = vlaneseq
        %v310 = vshrl.u32 %v309, 7
        %v311 = vsub.s32 0, %v310
        %v312 = vrot.slane %v307, %v311
        %v313 = vlaneseq
        %v314 = vshrl.u32 %v313, 7
        %v315 = vsub.s32 1, %v314
        %v316 = vrot.slane %v307, %v315
        %v317 = vlaneseq
        %v318 = vshrl.u32 %v317, 7
        %v319 = vsub.s32 2, %v318
        %v320 = vrot.slane %v307, %v319
        %v321 = vlaneseq
        %v322 = vshrl.u32 %v321, 7
        %v323 = vsub.s32 3, %v322
        %v324 = vrot.slane %v307, %v323
        %v361 = vunpack.c.l.b16 %v275
        %v362 = vunpack.c.h.b16 %v275
        %v363 = vunpack.c.l.b16 %v276
        %v364 = vunpack.c.h.b16 %v276
        %v365 = vunpack.c.l.b16 %v277
        %v366 = vunpack.c.h.b16 %v277
        %v367 = vunpack.c.l.b16 %v278
        %v368 = vunpack.c.h.b16 %v278
        %v369 = vunpack.c.l.b16 %v279
        %v370 = vunpack.c.h.b16 %v279
        %v371 = vunpack.c.l.b16 %v280
        %v372 = vunpack.c.h.b16 %v280
        %v373 = vunpack.c.l.b16 %v281
        %v374 = vunpack.c.h.b16 %v281
        %v375 = vunpack.c.l.b16 %v282
        %v376 = vunpack.c.h.b16 %v282
        %v377 = vunpack.c.l.b16 %v283
        %v378 = vunpack.c.h.b16 %v283
        %v379 = vunpack.c.l.b16 %v284
        %v380 = vunpack.c.h.b16 %v284
        %v381 = vunpack.c.l.b16 %v285
        %v382 = vunpack.c.h.b16 %v285
        %v383 = vunpack.c.l.b16 %v286
        %v384 = vunpack.c.h.b16 %v286
        %v385 = vunpack.c.l.b16 %v287
        %v386 = vunpack.c.h.b16 %v287
        %v387 = vunpack.c.l.b16 %v288
        %v388 = vunpack.c.h.b16 %v288
        %v389 = vunpack.c.l.b16 %v289
        %v390 = vunpack.c.h.b16 %v289
        %v391 = vunpack.c.l.b16 %v290
        %v392 = vunpack.c.h.b16 %v290
        %v393 = vunpack.c.l.b16 %v291
        %v394 = vunpack.c.h.b16 %v291
        %v395 = vunpack.c.l.b16 %v292
        %v396 = vunpack.c.h.b16 %v292
        %v397 = vunpack.c.l.b16 %v293
        %v398 = vunpack.c.h.b16 %v293
        %v399 = vunpack.c.l.b16 %v294
        %v400 = vunpack.c.h.b16 %v294
        %v401 = vunpack.c.l.b16 %v295
        %v402 = vunpack.c.h.b16 %v295
        %v403 = vunpack.c.l.b16 %v296
        %v404 = vunpack.c.h.b16 %v296
        %v405 = vunpack.c.l.b16 %v297
        %v406 = vunpack.c.h.b16 %v297
        %v407 = vunpack.c.l.b16 %v298
        %v408 = vunpack.c.h.b16 %v298
        %v409 = vunpack.c.l.b16 %v299
        %v410 = vunpack.c.h.b16 %v299
        %v411 = vunpack.c.l.b16 %v300
        %v412 = vunpack.c.h.b16 %v300
        %v413 = vunpack.c.l.b16 %v301
        %v414 = vunpack.c.h.b16 %v301
        %v415 = vunpack.c.l.b16 %v302
        %v416 = vunpack.c.h.b16 %v302
        %v417 = vunpack.c.l.b16 %v303
        %v418 = vunpack.c.h.b16 %v303
        %v419 = vunpack.c.l.b16 %v304
        %v420 = vunpack.c.h.b16 %v304
        %v421 = vunpack.c.l.b16 %v305
        %v422 = vunpack.c.h.b16 %v305
        %v423 = vunpack.c.l.b16 %v306
        %v424 = vunpack.c.h.b16 %v306
        %v425 = vpack.c.b16 %v365, %v361
        %v426 = vpack.c.b16 %v366, %v362
        %v427 = vpack.c.b16 %v367, %v363
        %v428 = vpack.c.b16 %v368, %v364
        %v429 = vpack.c.b16 %v373, %v369
        %v430 = vpack.c.b16 %v374, %v370
        %v431 = vpack.c.b16 %v375, %v371
        %v432 = vpack.c.b16 %v376, %v372
        %v433 = vpack.c.b16 %v381, %v377
        %v434 = vpack.c.b16 %v382, %v378
        %v435 = vpack.c.b16 %v383, %v379
        %v436 = vpack.c.b16 %v384, %v380
        %v437 = vpack.c.b16 %v389, %v385
        %v438 = vpack.c.b16 %v390, %v386
        %v439 = vpack.c.b16 %v391, %v387
        %v440 = vpack.c.b16 %v392, %v388
        %v441 = vpack.c.b16 %v397, %v393
        %v442 = vpack.c.b16 %v398, %v394
        %v443 = vpack.c.b16 %v399, %v395
        %v444 = vpack.c.b16 %v400, %v396
        %v445 = vpack.c.b16 %v405, %v401
        %v446 = vpack.c.b16 %v406, %v402
        %v447 = vpack.c.b16 %v407, %v403
        %v448 = vpack.c.b16 %v408, %v404
        %v449 = vpack.c.b16 %v413, %v409
        %v450 = vpack.c.b16 %v414, %v410
        %v451 = vpack.c.b16 %v415, %v411
        %v452 = vpack.c.b16 %v416, %v412
        %v453 = vpack.c.b16 %v421, %v417
        %v454 = vpack.c.b16 %v422, %v418
        %v455 = vpack.c.b16 %v423, %v419
        %v456 = vpack.c.b16 %v424, %v420
        %489 = vmatprep.subr.bf16.mxu0 %v454
        %490 = vmatpush1.bf16.msra.mxu0 %v453
        %491 = vmatprep.subr.bf16.mxu0 %v450
        %492 = vmatpush1.bf16.msra.mxu0 %v449
        %493 = vmatprep.subr.bf16.mxu0 %v446
        %494 = vmatpush1.bf16.msra.mxu0 %v445
        %495 = vmatprep.subr.bf16.mxu0 %v442
        %496 = vmatpush1.bf16.msra.mxu0 %v441
        %497 = vmatprep.subr.bf16.mxu0 %v438
        %498 = vmatpush1.bf16.msra.mxu0 %v437
        %499 = vmatprep.subr.bf16.mxu0 %v434
        %500 = vmatpush1.bf16.msra.mxu0 %v433
        %501 = vmatprep.subr.bf16.mxu0 %v430
        %502 = vmatpush1.bf16.msra.mxu0 %v429
        %503 = vmatprep.subr.bf16.mxu0 %v426
        %504 = vmatpush1.bf16.msra.mxu0 %v425
        %505 = vmatprep.subr.bf16.mxu0 0
        %506 = vmatpush2.bf16.msra.mxu0 0
        %507 = vmatprep.subr.bf16.mxu0 0
        %508 = vmatpush2.bf16.msra.mxu0 0
        %509 = vmatprep.subr.bf16.mxu0 0
        %510 = vmatpush2.bf16.msra.mxu0 0
        %511 = vmatprep.subr.bf16.mxu0 0
        %512 = vmatpush2.bf16.msra.mxu0 0
        %513 = vmatprep.subr.bf16.mxu0 0
        %514 = vmatpush2.bf16.msra.mxu0 0
        %515 = vmatprep.subr.bf16.mxu0 0
        %516 = vmatpush2.bf16.msra.mxu0 0
        %517 = vmatprep.subr.bf16.mxu0 0
        %518 = vmatpush2.bf16.msra.mxu0 0
        %519 = vmatprep.subr.bf16.mxu0 0
        %520 = vmatpush2.bf16.msra.mxu0 0
        %521 = vmatprep.mubr.bf16.mxu0 0
        %522 = vmatmul.mubr.bf16.gmra.mxu0 %v259
        %v523 = vpop.f32.mrf.mxu0
        %v524 = vadd.f32 %v312, %v523
        %v525 = vpop.f32.mrf.mxu0
        %v526 = vadd.f32 %v316, %v525
        %v527 = vpop.f32.mrf.mxu0
        %v528 = vadd.f32 %v312, %v527
        %v529 = vpop.f32.mrf.mxu0
        %v530 = vadd.f32 %v316, %v529
        %531 = vmatprep.mubr.bf16.mxu0 0
        %532 = vmatmul.mubr.bf16.gmra.mxu0 %v260
        %v533 = vpop.f32.mrf.mxu0
        %v534 = vadd.f32 %v312, %v533
        %v535 = vpop.f32.mrf.mxu0
        %v536 = vadd.f32 %v316, %v535
        %v537 = vpop.f32.mrf.mxu0
        %v538 = vadd.f32 %v312, %v537
        %v539 = vpop.f32.mrf.mxu0
        %v540 = vadd.f32 %v316, %v539
        %541 = vmatprep.mubr.bf16.mxu0 0
        %542 = vmatmul.mubr.bf16.gmra.mxu0 %v261
        %v543 = vpop.f32.mrf.mxu0
        %v544 = vadd.f32 %v312, %v543
        %v545 = vpop.f32.mrf.mxu0
        %v546 = vadd.f32 %v316, %v545
        %v547 = vpop.f32.mrf.mxu0
        %v548 = vadd.f32 %v312, %v547
        %v549 = vpop.f32.mrf.mxu0
        %v550 = vadd.f32 %v316, %v549
        %551 = vmatprep.mubr.bf16.mxu0 0
        %552 = vmatmul.mubr.bf16.gmra.mxu0 %v262
        %v553 = vpop.f32.mrf.mxu0
        %v554 = vadd.f32 %v312, %v553
        %v555 = vpop.f32.mrf.mxu0
        %v556 = vadd.f32 %v316, %v555
        %v557 = vpop.f32.mrf.mxu0
        %v558 = vadd.f32 %v312, %v557
        %v559 = vpop.f32.mrf.mxu0
        %v560 = vadd.f32 %v316, %v559
        %561 = vmatprep.mubr.bf16.mxu0 0
        %562 = vmatmul.mubr.bf16.gmra.mxu0 %v263
        %v563 = vpop.f32.mrf.mxu0
        %v564 = vadd.f32 %v312, %v563
        %v565 = vpop.f32.mrf.mxu0
        %v566 = vadd.f32 %v316, %v565
        %v567 = vpop.f32.mrf.mxu0
        %v568 = vadd.f32 %v312, %v567
        %v569 = vpop.f32.mrf.mxu0
        %v570 = vadd.f32 %v316, %v569
        %571 = vmatprep.mubr.bf16.mxu0 0
        %572 = vmatmul.mubr.bf16.gmra.mxu0 %v264
        %v573 = vpop.f32.mrf.mxu0
        %v574 = vadd.f32 %v312, %v573
        %v575 = vpop.f32.mrf.mxu0
        %v576 = vadd.f32 %v316, %v575
        %v577 = vpop.f32.mrf.mxu0
        %v578 = vadd.f32 %v312, %v577
        %v579 = vpop.f32.mrf.mxu0
        %v580 = vadd.f32 %v316, %v579
        %581 = vmatprep.mubr.bf16.mxu0 0
        %582 = vmatmul.mubr.bf16.gmra.mxu0 %v265
        %v583 = vpop.f32.mrf.mxu0
        %v584 = vadd.f32 %v312, %v583
        %v585 = vpop.f32.mrf.mxu0
        %v586 = vadd.f32 %v316, %v585
        %v587 = vpop.f32.mrf.mxu0
        %v588 = vadd.f32 %v312, %v587
        %v589 = vpop.f32.mrf.mxu0
        %v590 = vadd.f32 %v316, %v589
        %591 = vmatprep.mubr.bf16.mxu0 0
        %592 = vmatmul.mubr.bf16.gmra.mxu0 %v266
        %v593 = vpop.f32.mrf.mxu0
        %v594 = vadd.f32 %v312, %v593
        %v595 = vpop.f32.mrf.mxu0
        %v596 = vadd.f32 %v316, %v595
        %v597 = vpop.f32.mrf.mxu0
        %v598 = vadd.f32 %v312, %v597
        %v599 = vpop.f32.mrf.mxu0
        %v600 = vadd.f32 %v316, %v599
        %601 = vmatprep.mubr.bf16.mxu0 0
        %602 = vmatmul.mubr.bf16.gmra.mxu0 %v267
        %v603 = vpop.f32.mrf.mxu0
        %v604 = vadd.f32 %v312, %v603
        %v605 = vpop.f32.mrf.mxu0
        %v606 = vadd.f32 %v316, %v605
        %v607 = vpop.f32.mrf.mxu0
        %v608 = vadd.f32 %v312, %v607
        %v609 = vpop.f32.mrf.mxu0
        %v610 = vadd.f32 %v316, %v609
        %611 = vmatprep.mubr.bf16.mxu0 0
        %612 = vmatmul.mubr.bf16.gmra.mxu0 %v268
        %v613 = vpop.f32.mrf.mxu0
        %v614 = vadd.f32 %v312, %v613
        %v615 = vpop.f32.mrf.mxu0
        %v616 = vadd.f32 %v316, %v615
        %v617 = vpop.f32.mrf.mxu0
        %v618 = vadd.f32 %v312, %v617
        %v619 = vpop.f32.mrf.mxu0
        %v620 = vadd.f32 %v316, %v619
        %621 = vmatprep.mubr.bf16.mxu0 0
        %622 = vmatmul.mubr.bf16.gmra.mxu0 %v269
        %v623 = vpop.f32.mrf.mxu0
        %v624 = vadd.f32 %v312, %v623
        %v625 = vpop.f32.mrf.mxu0
        %v626 = vadd.f32 %v316, %v625
        %v627 = vpop.f32.mrf.mxu0
        %v628 = vadd.f32 %v312, %v627
        %v629 = vpop.f32.mrf.mxu0
        %v630 = vadd.f32 %v316, %v629
        %631 = vmatprep.mubr.bf16.mxu0 0
        %632 = vmatmul.mubr.bf16.gmra.mxu0 %v270
        %v633 = vpop.f32.mrf.mxu0
        %v634 = vadd.f32 %v312, %v633
        %v635 = vpop.f32.mrf.mxu0
        %v636 = vadd.f32 %v316, %v635
        %v637 = vpop.f32.mrf.mxu0
        %v638 = vadd.f32 %v312, %v637
        %v639 = vpop.f32.mrf.mxu0
        %v640 = vadd.f32 %v316, %v639
        %641 = vmatprep.mubr.bf16.mxu0 0
        %642 = vmatmul.mubr.bf16.gmra.mxu0 %v271
        %v643 = vpop.f32.mrf.mxu0
        %v644 = vadd.f32 %v312, %v643
        %v645 = vpop.f32.mrf.mxu0
        %v646 = vadd.f32 %v316, %v645
        %v647 = vpop.f32.mrf.mxu0
        %v648 = vadd.f32 %v312, %v647
        %v649 = vpop.f32.mrf.mxu0
        %v650 = vadd.f32 %v316, %v649
        %651 = vmatprep.mubr.bf16.mxu0 0
        %652 = vmatmul.mubr.bf16.gmra.mxu0 %v272
        %v653 = vpop.f32.mrf.mxu0
        %v654 = vadd.f32 %v312, %v653
        %v655 = vpop.f32.mrf.mxu0
        %v656 = vadd.f32 %v316, %v655
        %v657 = vpop.f32.mrf.mxu0
        %v658 = vadd.f32 %v312, %v657
        %v659 = vpop.f32.mrf.mxu0
        %v660 = vadd.f32 %v316, %v659
        %661 = vmatprep.mubr.bf16.mxu0 0
        %662 = vmatmul.mubr.bf16.gmra.mxu0 %v273
        %v663 = vpop.f32.mrf.mxu0
        %v664 = vadd.f32 %v312, %v663
        %v665 = vpop.f32.mrf.mxu0
        %v666 = vadd.f32 %v316, %v665
        %v667 = vpop.f32.mrf.mxu0
        %v668 = vadd.f32 %v312, %v667
        %v669 = vpop.f32.mrf.mxu0
        %v670 = vadd.f32 %v316, %v669
        %671 = vmatprep.mubr.bf16.mxu0 0
        %672 = vmatmul.mubr.bf16.gmra.mxu0 %v274
        %v673 = vpop.f32.mrf.mxu0
        %v674 = vadd.f32 %v312, %v673
        %v675 = vpop.f32.mrf.mxu0
        %v676 = vadd.f32 %v316, %v675
        %v677 = vpop.f32.mrf.mxu0
        %v678 = vadd.f32 %v312, %v677
        %v679 = vpop.f32.mrf.mxu0
        %v680 = vadd.f32 %v316, %v679
        %681 = vdwg.mxu0
        %682 = vmatprep.subr.bf16.mxu0 %v456
        %683 = vmatpush1.bf16.msra.mxu0 %v455
        %684 = vmatprep.subr.bf16.mxu0 %v452
        %685 = vmatpush1.bf16.msra.mxu0 %v451
        %686 = vmatprep.subr.bf16.mxu0 %v448
        %687 = vmatpush1.bf16.msra.mxu0 %v447
        %688 = vmatprep.subr.bf16.mxu0 %v444
        %689 = vmatpush1.bf16.msra.mxu0 %v443
        %690 = vmatprep.subr.bf16.mxu0 %v440
        %691 = vmatpush1.bf16.msra.mxu0 %v439
        %692 = vmatprep.subr.bf16.mxu0 %v436
        %693 = vmatpush1.bf16.msra.mxu0 %v435
        %694 = vmatprep.subr.bf16.mxu0 %v432
        %695 = vmatpush1.bf16.msra.mxu0 %v431
        %696 = vmatprep.subr.bf16.mxu0 %v428
        %697 = vmatpush1.bf16.msra.mxu0 %v427
        %698 = vmatprep.subr.bf16.mxu0 0
        %699 = vmatpush2.bf16.msra.mxu0 0
        %700 = vmatprep.subr.bf16.mxu0 0
        %701 = vmatpush2.bf16.msra.mxu0 0
        %702 = vmatprep.subr.bf16.mxu0 0
        %703 = vmatpush2.bf16.msra.mxu0 0
        %704 = vmatprep.subr.bf16.mxu0 0
        %705 = vmatpush2.bf16.msra.mxu0 0
        %706 = vmatprep.subr.bf16.mxu0 0
        %707 = vmatpush2.bf16.msra.mxu0 0
        %708 = vmatprep.subr.bf16.mxu0 0
        %709 = vmatpush2.bf16.msra.mxu0 0
        %710 = vmatprep.subr.bf16.mxu0 0
        %711 = vmatpush2.bf16.msra.mxu0 0
        %712 = vmatprep.subr.bf16.mxu0 0
        %713 = vmatpush2.bf16.msra.mxu0 0
        %714 = vmatprep.mubr.bf16.mxu0 0
        %715 = vmatmul.mubr.bf16.gmra.mxu0 %v259
        %v716 = vpop.f32.mrf.mxu0
        %v717 = vadd.f32 %v320, %v716
        %v718 = vpop.f32.mrf.mxu0
        %v719 = vadd.f32 %v324, %v718
        %v720 = vpop.f32.mrf.mxu0
        %v721 = vadd.f32 %v320, %v720
        %v722 = vpop.f32.mrf.mxu0
        %v723 = vadd.f32 %v324, %v722
        %724 = vmatprep.mubr.bf16.mxu0 0
        %725 = vmatmul.mubr.bf16.gmra.mxu0 %v260
        %v726 = vpop.f32.mrf.mxu0
        %v727 = vadd.f32 %v320, %v726
        %v728 = vpop.f32.mrf.mxu0
        %v729 = vadd.f32 %v324, %v728
        %v730 = vpop.f32.mrf.mxu0
        %v731 = vadd.f32 %v320, %v730
        %v732 = vpop.f32.mrf.mxu0
        %v733 = vadd.f32 %v324, %v732
        %734 = vmatprep.mubr.bf16.mxu0 0
        %735 = vmatmul.mubr.bf16.gmra.mxu0 %v261
        %v736 = vpop.f32.mrf.mxu0
        %v737 = vadd.f32 %v320, %v736
        %v738 = vpop.f32.mrf.mxu0
        %v739 = vadd.f32 %v324, %v738
        %v740 = vpop.f32.mrf.mxu0
        %v741 = vadd.f32 %v320, %v740
        %v742 = vpop.f32.mrf.mxu0
        %v743 = vadd.f32 %v324, %v742
        %744 = vmatprep.mubr.bf16.mxu0 0
        %745 = vmatmul.mubr.bf16.gmra.mxu0 %v262
        %v746 = vpop.f32.mrf.mxu0
        %v747 = vadd.f32 %v320, %v746
        %v748 = vpop.f32.mrf.mxu0
        %v749 = vadd.f32 %v324, %v748
        %v750 = vpop.f32.mrf.mxu0
        %v751 = vadd.f32 %v320, %v750
        %v752 = vpop.f32.mrf.mxu0
        %v753 = vadd.f32 %v324, %v752
        %754 = vmatprep.mubr.bf16.mxu0 0
        %755 = vmatmul.mubr.bf16.gmra.mxu0 %v263
        %v756 = vpop.f32.mrf.mxu0
        %v757 = vadd.f32 %v320, %v756
        %v758 = vpop.f32.mrf.mxu0
        %v759 = vadd.f32 %v324, %v758
        %v760 = vpop.f32.mrf.mxu0
        %v761 = vadd.f32 %v320, %v760
        %v762 = vpop.f32.mrf.mxu0
        %v763 = vadd.f32 %v324, %v762
        %764 = vmatprep.mubr.bf16.mxu0 0
        %765 = vmatmul.mubr.bf16.gmra.mxu0 %v264
        %v766 = vpop.f32.mrf.mxu0
        %v767 = vadd.f32 %v320, %v766
        %v768 = vpop.f32.mrf.mxu0
        %v769 = vadd.f32 %v324, %v768
        %v770 = vpop.f32.mrf.mxu0
        %v771 = vadd.f32 %v320, %v770
        %v772 = vpop.f32.mrf.mxu0
        %v773 = vadd.f32 %v324, %v772
        %774 = vmatprep.mubr.bf16.mxu0 0
        %775 = vmatmul.mubr.bf16.gmra.mxu0 %v265
        %v776 = vpop.f32.mrf.mxu0
        %v777 = vadd.f32 %v320, %v776
        %v778 = vpop.f32.mrf.mxu0
        %v779 = vadd.f32 %v324, %v778
        %v780 = vpop.f32.mrf.mxu0
        %v781 = vadd.f32 %v320, %v780
        %v782 = vpop.f32.mrf.mxu0
        %v783 = vadd.f32 %v324, %v782
        %784 = vmatprep.mubr.bf16.mxu0 0
        %785 = vmatmul.mubr.bf16.gmra.mxu0 %v266
        %v786 = vpop.f32.mrf.mxu0
        %v787 = vadd.f32 %v320, %v786
        %v788 = vpop.f32.mrf.mxu0
        %v789 = vadd.f32 %v324, %v788
        %v790 = vpop.f32.mrf.mxu0
        %v791 = vadd.f32 %v320, %v790
        %v792 = vpop.f32.mrf.mxu0
        %v793 = vadd.f32 %v324, %v792
        %794 = vmatprep.mubr.bf16.mxu0 0
        %795 = vmatmul.mubr.bf16.gmra.mxu0 %v267
        %v796 = vpop.f32.mrf.mxu0
        %v797 = vadd.f32 %v320, %v796
        %v798 = vpop.f32.mrf.mxu0
        %v799 = vadd.f32 %v324, %v798
        %v800 = vpop.f32.mrf.mxu0
        %v801 = vadd.f32 %v320, %v800
        %v802 = vpop.f32.mrf.mxu0
        %v803 = vadd.f32 %v324, %v802
        %804 = vmatprep.mubr.bf16.mxu0 0
        %805 = vmatmul.mubr.bf16.gmra.mxu0 %v268
        %v806 = vpop.f32.mrf.mxu0
        %v807 = vadd.f32 %v320, %v806
        %v808 = vpop.f32.mrf.mxu0
        %v809 = vadd.f32 %v324, %v808
        %v810 = vpop.f32.mrf.mxu0
        %v811 = vadd.f32 %v320, %v810
        %v812 = vpop.f32.mrf.mxu0
        %v813 = vadd.f32 %v324, %v812
        %814 = vmatprep.mubr.bf16.mxu0 0
        %815 = vmatmul.mubr.bf16.gmra.mxu0 %v269
        %v816 = vpop.f32.mrf.mxu0
        %v817 = vadd.f32 %v320, %v816
        %v818 = vpop.f32.mrf.mxu0
        %v819 = vadd.f32 %v324, %v818
        %v820 = vpop.f32.mrf.mxu0
        %v821 = vadd.f32 %v320, %v820
        %v822 = vpop.f32.mrf.mxu0
        %v823 = vadd.f32 %v324, %v822
        %824 = vmatprep.mubr.bf16.mxu0 0
        %825 = vmatmul.mubr.bf16.gmra.mxu0 %v270
        %v826 = vpop.f32.mrf.mxu0
        %v827 = vadd.f32 %v320, %v826
        %v828 = vpop.f32.mrf.mxu0
        %v829 = vadd.f32 %v324, %v828
        %v830 = vpop.f32.mrf.mxu0
        %v831 = vadd.f32 %v320, %v830
        %v832 = vpop.f32.mrf.mxu0
        %v833 = vadd.f32 %v324, %v832
        %834 = vmatprep.mubr.bf16.mxu0 0
        %835 = vmatmul.mubr.bf16.gmra.mxu0 %v271
        %v836 = vpop.f32.mrf.mxu0
        %v837 = vadd.f32 %v320, %v836
        %v838 = vpop.f32.mrf.mxu0
        %v839 = vadd.f32 %v324, %v838
        %v840 = vpop.f32.mrf.mxu0
        %v841 = vadd.f32 %v320, %v840
        %v842 = vpop.f32.mrf.mxu0
        %v843 = vadd.f32 %v324, %v842
        %844 = vmatprep.mubr.bf16.mxu0 0
        %845 = vmatmul.mubr.bf16.gmra.mxu0 %v272
        %v846 = vpop.f32.mrf.mxu0
        %v847 = vadd.f32 %v320, %v846
        %v848 = vpop.f32.mrf.mxu0
        %v849 = vadd.f32 %v324, %v848
        %v850 = vpop.f32.mrf.mxu0
        %v851 = vadd.f32 %v320, %v850
        %v852 = vpop.f32.mrf.mxu0
        %v853 = vadd.f32 %v324, %v852
        %854 = vmatprep.mubr.bf16.mxu0 0
        %855 = vmatmul.mubr.bf16.gmra.mxu0 %v273
        %v856 = vpop.f32.mrf.mxu0
        %v857 = vadd.f32 %v320, %v856
        %v858 = vpop.f32.mrf.mxu0
        %v859 = vadd.f32 %v324, %v858
        %v860 = vpop.f32.mrf.mxu0
        %v861 = vadd.f32 %v320, %v860
        %v862 = vpop.f32.mrf.mxu0
        %v863 = vadd.f32 %v324, %v862
        %864 = vmatprep.mubr.bf16.mxu0 0
        %865 = vmatmul.mubr.bf16.gmra.mxu0 %v274
        %v866 = vpop.f32.mrf.mxu0
        %v867 = vadd.f32 %v320, %v866
        %v868 = vpop.f32.mrf.mxu0
        %v869 = vadd.f32 %v324, %v868
        %v870 = vpop.f32.mrf.mxu0
        %v871 = vadd.f32 %v320, %v870
        %v872 = vpop.f32.mrf.mxu0
        %v873 = vadd.f32 %v324, %v872
        %874 = vdwg.mxu0
        %v875 = vmax.f32 %v524, 0.0
        %v876 = vmax.f32 %v526, 0.0
        %v877 = vmax.f32 %v717, 0.0
        %v878 = vmax.f32 %v719, 0.0
        %v879 = vmax.f32 %v528, 0.0
        %v880 = vmax.f32 %v530, 0.0
        %v881 = vmax.f32 %v721, 0.0
        %v882 = vmax.f32 %v723, 0.0
        %v883 = vmax.f32 %v534, 0.0
        %v884 = vmax.f32 %v536, 0.0
        %v885 = vmax.f32 %v727, 0.0
        %v886 = vmax.f32 %v729, 0.0
        %v887 = vmax.f32 %v538, 0.0
        %v888 = vmax.f32 %v540, 0.0
        %v889 = vmax.f32 %v731, 0.0
        %v890 = vmax.f32 %v733, 0.0
        %v891 = vmax.f32 %v544, 0.0
        %v892 = vmax.f32 %v546, 0.0
        %v893 = vmax.f32 %v737, 0.0
        %v894 = vmax.f32 %v739, 0.0
        %v895 = vmax.f32 %v548, 0.0
        %v896 = vmax.f32 %v550, 0.0
        %v897 = vmax.f32 %v741, 0.0
        %v898 = vmax.f32 %v743, 0.0
        %v899 = vmax.f32 %v554, 0.0
        %v900 = vmax.f32 %v556, 0.0
        %v901 = vmax.f32 %v747, 0.0
        %v902 = vmax.f32 %v749, 0.0
        %v903 = vmax.f32 %v558, 0.0
        %v904 = vmax.f32 %v560, 0.0
        %v905 = vmax.f32 %v751, 0.0
        %v906 = vmax.f32 %v753, 0.0
        %v907 = vmax.f32 %v564, 0.0
        %v908 = vmax.f32 %v566, 0.0
        %v909 = vmax.f32 %v757, 0.0
        %v910 = vmax.f32 %v759, 0.0
        %v911 = vmax.f32 %v568, 0.0
        %v912 = vmax.f32 %v570, 0.0
        %v913 = vmax.f32 %v761, 0.0
        %v914 = vmax.f32 %v763, 0.0
        %v915 = vmax.f32 %v574, 0.0
        %v916 = vmax.f32 %v576, 0.0
        %v917 = vmax.f32 %v767, 0.0
        %v918 = vmax.f32 %v769, 0.0
        %v919 = vmax.f32 %v578, 0.0
        %v920 = vmax.f32 %v580, 0.0
        %v921 = vmax.f32 %v771, 0.0
        %v922 = vmax.f32 %v773, 0.0
        %v923 = vmax.f32 %v584, 0.0
        %v924 = vmax.f32 %v586, 0.0
        %v925 = vmax.f32 %v777, 0.0
        %v926 = vmax.f32 %v779, 0.0
        %v927 = vmax.f32 %v588, 0.0
        %v928 = vmax.f32 %v590, 0.0
        %v929 = vmax.f32 %v781, 0.0
        %v930 = vmax.f32 %v783, 0.0
        %v931 = vmax.f32 %v594, 0.0
        %v932 = vmax.f32 %v596, 0.0
        %v933 = vmax.f32 %v787, 0.0
        %v934 = vmax.f32 %v789, 0.0
        %v935 = vmax.f32 %v598, 0.0
        %v936 = vmax.f32 %v600, 0.0
        %v937 = vmax.f32 %v791, 0.0
        %v938 = vmax.f32 %v793, 0.0
        %v939 = vmax.f32 %v604, 0.0
        %v940 = vmax.f32 %v606, 0.0
        %v941 = vmax.f32 %v797, 0.0
        %v942 = vmax.f32 %v799, 0.0
        %v943 = vmax.f32 %v608, 0.0
        %v944 = vmax.f32 %v610, 0.0
        %v945 = vmax.f32 %v801, 0.0
        %v946 = vmax.f32 %v803, 0.0
        %v947 = vmax.f32 %v614, 0.0
        %v948 = vmax.f32 %v616, 0.0
        %v949 = vmax.f32 %v807, 0.0
        %v950 = vmax.f32 %v809, 0.0
        %v951 = vmax.f32 %v618, 0.0
        %v952 = vmax.f32 %v620, 0.0
        %v953 = vmax.f32 %v811, 0.0
        %v954 = vmax.f32 %v813, 0.0
        %v955 = vmax.f32 %v624, 0.0
        %v956 = vmax.f32 %v626, 0.0
        %v957 = vmax.f32 %v817, 0.0
        %v958 = vmax.f32 %v819, 0.0
        %v959 = vmax.f32 %v628, 0.0
        %v960 = vmax.f32 %v630, 0.0
        %v961 = vmax.f32 %v821, 0.0
        %v962 = vmax.f32 %v823, 0.0
        %v963 = vmax.f32 %v634, 0.0
        %v964 = vmax.f32 %v636, 0.0
        %v965 = vmax.f32 %v827, 0.0
        %v966 = vmax.f32 %v829, 0.0
        %v967 = vmax.f32 %v638, 0.0
        %v968 = vmax.f32 %v640, 0.0
        %v969 = vmax.f32 %v831, 0.0
        %v970 = vmax.f32 %v833, 0.0
        %v971 = vmax.f32 %v644, 0.0
        %v972 = vmax.f32 %v646, 0.0
        %v973 = vmax.f32 %v837, 0.0
        %v974 = vmax.f32 %v839, 0.0
        %v975 = vmax.f32 %v648, 0.0
        %v976 = vmax.f32 %v650, 0.0
        %v977 = vmax.f32 %v841, 0.0
        %v978 = vmax.f32 %v843, 0.0
        %v979 = vmax.f32 %v654, 0.0
        %v980 = vmax.f32 %v656, 0.0
        %v981 = vmax.f32 %v847, 0.0
        %v982 = vmax.f32 %v849, 0.0
        %v983 = vmax.f32 %v658, 0.0
        %v984 = vmax.f32 %v660, 0.0
        %v985 = vmax.f32 %v851, 0.0
        %v986 = vmax.f32 %v853, 0.0
        %v987 = vmax.f32 %v664, 0.0
        %v988 = vmax.f32 %v666, 0.0
        %v989 = vmax.f32 %v857, 0.0
        %v990 = vmax.f32 %v859, 0.0
        %v991 = vmax.f32 %v668, 0.0
        %v992 = vmax.f32 %v670, 0.0
        %v993 = vmax.f32 %v861, 0.0
        %v994 = vmax.f32 %v863, 0.0
        %v995 = vmax.f32 %v674, 0.0
        %v996 = vmax.f32 %v676, 0.0
        %v997 = vmax.f32 %v867, 0.0
        %v998 = vmax.f32 %v869, 0.0
        %v999 = vmax.f32 %v678, 0.0
        %v1000 = vmax.f32 %v680, 0.0
        %v1001 = vmax.f32 %v871, 0.0
        %v1002 = vmax.f32 %v873, 0.0
        %v1003 = vpack.c.bf16 %v879, %v875
        %v1004 = vpack.c.bf16 %v880, %v876
        %v1005 = vpack.c.bf16 %v881, %v877
        %v1006 = vpack.c.bf16 %v882, %v878
        %v1007 = vpack.c.bf16 %v887, %v883
        %v1008 = vpack.c.bf16 %v888, %v884
        %v1009 = vpack.c.bf16 %v889, %v885
        %v1010 = vpack.c.bf16 %v890, %v886
        %v1011 = vpack.c.bf16 %v895, %v891
        %v1012 = vpack.c.bf16 %v896, %v892
        %v1013 = vpack.c.bf16 %v897, %v893
        %v1014 = vpack.c.bf16 %v898, %v894
        %v1015 = vpack.c.bf16 %v903, %v899
        %v1016 = vpack.c.bf16 %v904, %v900
        %v1017 = vpack.c.bf16 %v905, %v901
        %v1018 = vpack.c.bf16 %v906, %v902
        %v1019 = vpack.c.bf16 %v911, %v907
        %v1020 = vpack.c.bf16 %v912, %v908
        %v1021 = vpack.c.bf16 %v913, %v909
        %v1022 = vpack.c.bf16 %v914, %v910
        %v1023 = vpack.c.bf16 %v919, %v915
        %v1024 = vpack.c.bf16 %v920, %v916
        %v1025 = vpack.c.bf16 %v921, %v917
        %v1026 = vpack.c.bf16 %v922, %v918
        %v1027 = vpack.c.bf16 %v927, %v923
        %v1028 = vpack.c.bf16 %v928, %v924
        %v1029 = vpack.c.bf16 %v929, %v925
        %v1030 = vpack.c.bf16 %v930, %v926
        %v1031 = vpack.c.bf16 %v935, %v931
        %v1032 = vpack.c.bf16 %v936, %v932
        %v1033 = vpack.c.bf16 %v937, %v933
        %v1034 = vpack.c.bf16 %v938, %v934
        %v1035 = vpack.c.bf16 %v943, %v939
        %v1036 = vpack.c.bf16 %v944, %v940
        %v1037 = vpack.c.bf16 %v945, %v941
        %v1038 = vpack.c.bf16 %v946, %v942
        %v1039 = vpack.c.bf16 %v951, %v947
        %v1040 = vpack.c.bf16 %v952, %v948
        %v1041 = vpack.c.bf16 %v953, %v949
        %v1042 = vpack.c.bf16 %v954, %v950
        %v1043 = vpack.c.bf16 %v959, %v955
        %v1044 = vpack.c.bf16 %v960, %v956
        %v1045 = vpack.c.bf16 %v961, %v957
        %v1046 = vpack.c.bf16 %v962, %v958
        %v1047 = vpack.c.bf16 %v967, %v963
        %v1048 = vpack.c.bf16 %v968, %v964
        %v1049 = vpack.c.bf16 %v969, %v965
        %v1050 = vpack.c.bf16 %v970, %v966
        %v1051 = vpack.c.bf16 %v975, %v971
        %v1052 = vpack.c.bf16 %v976, %v972
        %v1053 = vpack.c.bf16 %v977, %v973
        %v1054 = vpack.c.bf16 %v978, %v974
        %v1055 = vpack.c.bf16 %v983, %v979
        %v1056 = vpack.c.bf16 %v984, %v980
        %v1057 = vpack.c.bf16 %v985, %v981
        %v1058 = vpack.c.bf16 %v986, %v982
        %v1059 = vpack.c.bf16 %v991, %v987
        %v1060 = vpack.c.bf16 %v992, %v988
        %v1061 = vpack.c.bf16 %v993, %v989
        %v1062 = vpack.c.bf16 %v994, %v990
        %v1063 = vpack.c.bf16 %v999, %v995
        %v1064 = vpack.c.bf16 %v1000, %v996
        %v1065 = vpack.c.bf16 %v1001, %v997
        %v1066 = vpack.c.bf16 %v1002, %v998
        %v1067 = vld [vmem:[%s3] sm:$0xf]
        %v1068 = vld [vmem:[%s3 + $0x4] sm:$0xf]
        %v1069 = vld [vmem:[%s3 + $0x8] sm:$0xf]
        %v1070 = vld [vmem:[%s3 + $0xc] sm:$0xf]
        %v1071 = vld [vmem:[%s3 + $0x10] sm:$0xf]
        %v1072 = vld [vmem:[%s3 + $0x14] sm:$0xf]
        %v1073 = vld [vmem:[%s3 + $0x18] sm:$0xf]
        %v1074 = vld [vmem:[%s3 + $0x1c] sm:$0xf]
        %v1075 = vld [vmem:[%s3 + $0x20] sm:$0xf]
        %v1076 = vld [vmem:[%s3 + $0x24] sm:$0xf]
        %v1077 = vld [vmem:[%s3 + $0x28] sm:$0xf]
        %v1078 = vld [vmem:[%s3 + $0x2c] sm:$0xf]
        %v1079 = vld [vmem:[%s3 + $0x30] sm:$0xf]
        %v1080 = vld [vmem:[%s3 + $0x34] sm:$0xf]
        %v1081 = vld [vmem:[%s3 + $0x38] sm:$0xf]
        %v1082 = vld [vmem:[%s3 + $0x3c] sm:$0xf]
        %v1083 = vld [vmem:[%s3 + $0x40] sm:$0xf]
        %v1084 = vld [vmem:[%s3 + $0x44] sm:$0xf]
        %v1085 = vld [vmem:[%s3 + $0x48] sm:$0xf]
        %v1086 = vld [vmem:[%s3 + $0x4c] sm:$0xf]
        %v1087 = vld [vmem:[%s3 + $0x50] sm:$0xf]
        %v1088 = vld [vmem:[%s3 + $0x54] sm:$0xf]
        %v1089 = vld [vmem:[%s3 + $0x58] sm:$0xf]
        %v1090 = vld [vmem:[%s3 + $0x5c] sm:$0xf]
        %v1091 = vld [vmem:[%s3 + $0x60] sm:$0xf]
        %v1092 = vld [vmem:[%s3 + $0x64] sm:$0xf]
        %v1093 = vld [vmem:[%s3 + $0x68] sm:$0xf]
        %v1094 = vld [vmem:[%s3 + $0x6c] sm:$0xf]
        %v1095 = vld [vmem:[%s3 + $0x70] sm:$0xf]
        %v1096 = vld [vmem:[%s3 + $0x74] sm:$0xf]
        %v1097 = vld [vmem:[%s3 + $0x78] sm:$0xf]
        %v1098 = vld [vmem:[%s3 + $0x7c] sm:$0xf]
        %v1099 = vld [vmem:[%s3 + $0x80] sm:$0xf]
        %v1100 = vld [vmem:[%s3 + $0x84] sm:$0xf]
        %v1101 = vld [vmem:[%s3 + $0x88] sm:$0xf]
        %v1102 = vld [vmem:[%s3 + $0x8c] sm:$0xf]
        %v1103 = vld [vmem:[%s3 + $0x90] sm:$0xf]
        %v1104 = vld [vmem:[%s3 + $0x94] sm:$0xf]
        %v1105 = vld [vmem:[%s3 + $0x98] sm:$0xf]
        %v1106 = vld [vmem:[%s3 + $0x9c] sm:$0xf]
        %v1107 = vld [vmem:[%s3 + $0xa0] sm:$0xf]
        %v1108 = vld [vmem:[%s3 + $0xa4] sm:$0xf]
        %v1109 = vld [vmem:[%s3 + $0xa8] sm:$0xf]
        %v1110 = vld [vmem:[%s3 + $0xac] sm:$0xf]
        %v1111 = vld [vmem:[%s3 + $0xb0] sm:$0xf]
        %v1112 = vld [vmem:[%s3 + $0xb4] sm:$0xf]
        %v1113 = vld [vmem:[%s3 + $0xb8] sm:$0xf]
        %v1114 = vld [vmem:[%s3 + $0xbc] sm:$0xf]
        %v1115 = vld [vmem:[%s3 + $0xc0] sm:$0xf]
        %v1116 = vld [vmem:[%s3 + $0xc4] sm:$0xf]
        %v1117 = vld [vmem:[%s3 + $0xc8] sm:$0xf]
        %v1118 = vld [vmem:[%s3 + $0xcc] sm:$0xf]
        %v1119 = vld [vmem:[%s3 + $0xd0] sm:$0xf]
        %v1120 = vld [vmem:[%s3 + $0xd4] sm:$0xf]
        %v1121 = vld [vmem:[%s3 + $0xd8] sm:$0xf]
        %v1122 = vld [vmem:[%s3 + $0xdc] sm:$0xf]
        %v1123 = vld [vmem:[%s3 + $0xe0] sm:$0xf]
        %v1124 = vld [vmem:[%s3 + $0xe4] sm:$0xf]
        %v1125 = vld [vmem:[%s3 + $0xe8] sm:$0xf]
        %v1126 = vld [vmem:[%s3 + $0xec] sm:$0xf]
        %v1127 = vld [vmem:[%s3 + $0xf0] sm:$0xf]
        %v1128 = vld [vmem:[%s3 + $0xf4] sm:$0xf]
        %v1129 = vld [vmem:[%s3 + $0xf8] sm:$0xf]
        %v1130 = vld [vmem:[%s3 + $0xfc] sm:$0xf]
        %v1131 = vld [vmem:[%s4] sm:$0x1]
        %v1133 = vlaneseq
        %v1134 = vshrl.u32 %v1133, 7
        %v1135 = vsub.s32 0, %v1134
        %v1136 = vrot.slane %v1131, %v1135
        %v1202 = vunpack.c.l.b16 %v1067
        %v1203 = vunpack.c.l.b16 %v1068
        %v1204 = vunpack.c.l.b16 %v1069
        %v1205 = vunpack.c.l.b16 %v1070
        %v1206 = vunpack.c.l.b16 %v1071
        %v1207 = vunpack.c.l.b16 %v1072
        %v1208 = vunpack.c.l.b16 %v1073
        %v1209 = vunpack.c.l.b16 %v1074
        %v1210 = vunpack.c.l.b16 %v1075
        %v1211 = vunpack.c.l.b16 %v1076
        %v1212 = vunpack.c.l.b16 %v1077
        %v1213 = vunpack.c.l.b16 %v1078
        %v1214 = vunpack.c.l.b16 %v1079
        %v1215 = vunpack.c.l.b16 %v1080
        %v1216 = vunpack.c.l.b16 %v1081
        %v1217 = vunpack.c.l.b16 %v1082
        %v1218 = vunpack.c.l.b16 %v1083
        %v1219 = vunpack.c.l.b16 %v1084
        %v1220 = vunpack.c.l.b16 %v1085
        %v1221 = vunpack.c.l.b16 %v1086
        %v1222 = vunpack.c.l.b16 %v1087
        %v1223 = vunpack.c.l.b16 %v1088
        %v1224 = vunpack.c.l.b16 %v1089
        %v1225 = vunpack.c.l.b16 %v1090
        %v1226 = vunpack.c.l.b16 %v1091
        %v1227 = vunpack.c.l.b16 %v1092
        %v1228 = vunpack.c.l.b16 %v1093
        %v1229 = vunpack.c.l.b16 %v1094
        %v1230 = vunpack.c.l.b16 %v1095
        %v1231 = vunpack.c.l.b16 %v1096
        %v1232 = vunpack.c.l.b16 %v1097
        %v1233 = vunpack.c.l.b16 %v1098
        %v1234 = vunpack.c.l.b16 %v1099
        %v1235 = vunpack.c.l.b16 %v1100
        %v1236 = vunpack.c.l.b16 %v1101
        %v1237 = vunpack.c.l.b16 %v1102
        %v1238 = vunpack.c.l.b16 %v1103
        %v1239 = vunpack.c.l.b16 %v1104
        %v1240 = vunpack.c.l.b16 %v1105
        %v1241 = vunpack.c.l.b16 %v1106
        %v1242 = vunpack.c.l.b16 %v1107
        %v1243 = vunpack.c.l.b16 %v1108
        %v1244 = vunpack.c.l.b16 %v1109
        %v1245 = vunpack.c.l.b16 %v1110
        %v1246 = vunpack.c.l.b16 %v1111
        %v1247 = vunpack.c.l.b16 %v1112
        %v1248 = vunpack.c.l.b16 %v1113
        %v1249 = vunpack.c.l.b16 %v1114
        %v1250 = vunpack.c.l.b16 %v1115
        %v1251 = vunpack.c.l.b16 %v1116
        %v1252 = vunpack.c.l.b16 %v1117
        %v1253 = vunpack.c.l.b16 %v1118
        %v1254 = vunpack.c.l.b16 %v1119
        %v1255 = vunpack.c.l.b16 %v1120
        %v1256 = vunpack.c.l.b16 %v1121
        %v1257 = vunpack.c.l.b16 %v1122
        %v1258 = vunpack.c.l.b16 %v1123
        %v1259 = vunpack.c.l.b16 %v1124
        %v1260 = vunpack.c.l.b16 %v1125
        %v1261 = vunpack.c.l.b16 %v1126
        %v1262 = vunpack.c.l.b16 %v1127
        %v1263 = vunpack.c.l.b16 %v1128
        %v1264 = vunpack.c.l.b16 %v1129
        %v1265 = vunpack.c.l.b16 %v1130
        %v1266 = vpack.c.b16 %v1203, %v1202
        %v1267 = vpack.c.b16 %v1205, %v1204
        %v1268 = vpack.c.b16 %v1207, %v1206
        %v1269 = vpack.c.b16 %v1209, %v1208
        %v1270 = vpack.c.b16 %v1211, %v1210
        %v1271 = vpack.c.b16 %v1213, %v1212
        %v1272 = vpack.c.b16 %v1215, %v1214
        %v1273 = vpack.c.b16 %v1217, %v1216
        %v1274 = vpack.c.b16 %v1219, %v1218
        %v1275 = vpack.c.b16 %v1221, %v1220
        %v1276 = vpack.c.b16 %v1223, %v1222
        %v1277 = vpack.c.b16 %v1225, %v1224
        %v1278 = vpack.c.b16 %v1227, %v1226
        %v1279 = vpack.c.b16 %v1229, %v1228
        %v1280 = vpack.c.b16 %v1231, %v1230
        %v1281 = vpack.c.b16 %v1233, %v1232
        %v1282 = vpack.c.b16 %v1235, %v1234
        %v1283 = vpack.c.b16 %v1237, %v1236
        %v1284 = vpack.c.b16 %v1239, %v1238
        %v1285 = vpack.c.b16 %v1241, %v1240
        %v1286 = vpack.c.b16 %v1243, %v1242
        %v1287 = vpack.c.b16 %v1245, %v1244
        %v1288 = vpack.c.b16 %v1247, %v1246
        %v1289 = vpack.c.b16 %v1249, %v1248
        %v1290 = vpack.c.b16 %v1251, %v1250
        %v1291 = vpack.c.b16 %v1253, %v1252
        %v1292 = vpack.c.b16 %v1255, %v1254
        %v1293 = vpack.c.b16 %v1257, %v1256
        %v1294 = vpack.c.b16 %v1259, %v1258
        %v1295 = vpack.c.b16 %v1261, %v1260
        %v1296 = vpack.c.b16 %v1263, %v1262
        %v1297 = vpack.c.b16 %v1265, %v1264
        %1330 = vmatprep.subr.bf16.mxu0 0
        %1331 = vmatpush1.bf16.msra.mxu0 %v1273
        %1332 = vmatprep.subr.bf16.mxu0 0
        %1333 = vmatpush1.bf16.msra.mxu0 %v1272
        %1334 = vmatprep.subr.bf16.mxu0 0
        %1335 = vmatpush1.bf16.msra.mxu0 %v1271
        %1336 = vmatprep.subr.bf16.mxu0 0
        %1337 = vmatpush1.bf16.msra.mxu0 %v1270
        %1338 = vmatprep.subr.bf16.mxu0 0
        %1339 = vmatpush1.bf16.msra.mxu0 %v1269
        %1340 = vmatprep.subr.bf16.mxu0 0
        %1341 = vmatpush1.bf16.msra.mxu0 %v1268
        %1342 = vmatprep.subr.bf16.mxu0 0
        %1343 = vmatpush1.bf16.msra.mxu0 %v1267
        %1344 = vmatprep.subr.bf16.mxu0 0
        %1345 = vmatpush1.bf16.msra.mxu0 %v1266
        %1346 = vmatprep.subr.bf16.mxu0 0
        %1347 = vmatpush2.bf16.msra.mxu0 %v1281
        %1348 = vmatprep.subr.bf16.mxu0 0
        %1349 = vmatpush2.bf16.msra.mxu0 %v1280
        %1350 = vmatprep.subr.bf16.mxu0 0
        %1351 = vmatpush2.bf16.msra.mxu0 %v1279
        %1352 = vmatprep.subr.bf16.mxu0 0
        %1353 = vmatpush2.bf16.msra.mxu0 %v1278
        %1354 = vmatprep.subr.bf16.mxu0 0
        %1355 = vmatpush2.bf16.msra.mxu0 %v1277
        %1356 = vmatprep.subr.bf16.mxu0 0
        %1357 = vmatpush2.bf16.msra.mxu0 %v1276
        %1358 = vmatprep.subr.bf16.mxu0 0
        %1359 = vmatpush2.bf16.msra.mxu0 %v1275
        %1360 = vmatprep.subr.bf16.mxu0 0
        %1361 = vmatpush2.bf16.msra.mxu0 %v1274
        %1362 = vmatprep.mubr.bf16.mxu0 %v1004
        %1363 = vmatmul.mubr.bf16.gmra.mxu0 %v1003
        %v1364 = vpop.f32.mrf.mxu0
        %v1365 = vadd.f32 %v1136, %v1364
        %v1366 = vpop.f32.mrf.mxu0
        %v1367 = vpop.f32.mrf.mxu0
        %v1368 = vadd.f32 %v1136, %v1367
        %v1369 = vpop.f32.mrf.mxu0
        %1370 = vmatprep.mubr.bf16.mxu0 %v1008
        %1371 = vmatmul.mubr.bf16.gmra.mxu0 %v1007
        %v1372 = vpop.f32.mrf.mxu0
        %v1373 = vadd.f32 %v1136, %v1372
        %v1374 = vpop.f32.mrf.mxu0
        %v1375 = vpop.f32.mrf.mxu0
        %v1376 = vadd.f32 %v1136, %v1375
        %v1377 = vpop.f32.mrf.mxu0
        %1378 = vmatprep.mubr.bf16.mxu0 %v1012
        %1379 = vmatmul.mubr.bf16.gmra.mxu0 %v1011
        %v1380 = vpop.f32.mrf.mxu0
        %v1381 = vadd.f32 %v1136, %v1380
        %v1382 = vpop.f32.mrf.mxu0
        %v1383 = vpop.f32.mrf.mxu0
        %v1384 = vadd.f32 %v1136, %v1383
        %v1385 = vpop.f32.mrf.mxu0
        %1386 = vmatprep.mubr.bf16.mxu0 %v1016
        %1387 = vmatmul.mubr.bf16.gmra.mxu0 %v1015
        %v1388 = vpop.f32.mrf.mxu0
        %v1389 = vadd.f32 %v1136, %v1388
        %v1390 = vpop.f32.mrf.mxu0
        %v1391 = vpop.f32.mrf.mxu0
        %v1392 = vadd.f32 %v1136, %v1391
        %v1393 = vpop.f32.mrf.mxu0
        %1394 = vmatprep.mubr.bf16.mxu0 %v1020
        %1395 = vmatmul.mubr.bf16.gmra.mxu0 %v1019
        %v1396 = vpop.f32.mrf.mxu0
        %v1397 = vadd.f32 %v1136, %v1396
        %v1398 = vpop.f32.mrf.mxu0
        %v1399 = vpop.f32.mrf.mxu0
        %v1400 = vadd.f32 %v1136, %v1399
        %v1401 = vpop.f32.mrf.mxu0
        %1402 = vmatprep.mubr.bf16.mxu0 %v1024
        %1403 = vmatmul.mubr.bf16.gmra.mxu0 %v1023
        %v1404 = vpop.f32.mrf.mxu0
        %v1405 = vadd.f32 %v1136, %v1404
        %v1406 = vpop.f32.mrf.mxu0
        %v1407 = vpop.f32.mrf.mxu0
        %v1408 = vadd.f32 %v1136, %v1407
        %v1409 = vpop.f32.mrf.mxu0
        %1410 = vmatprep.mubr.bf16.mxu0 %v1028
        %1411 = vmatmul.mubr.bf16.gmra.mxu0 %v1027
        %v1412 = vpop.f32.mrf.mxu0
        %v1413 = vadd.f32 %v1136, %v1412
        %v1414 = vpop.f32.mrf.mxu0
        %v1415 = vpop.f32.mrf.mxu0
        %v1416 = vadd.f32 %v1136, %v1415
        %v1417 = vpop.f32.mrf.mxu0
        %1418 = vmatprep.mubr.bf16.mxu0 %v1032
        %1419 = vmatmul.mubr.bf16.gmra.mxu0 %v1031
        %v1420 = vpop.f32.mrf.mxu0
        %v1421 = vadd.f32 %v1136, %v1420
        %v1422 = vpop.f32.mrf.mxu0
        %v1423 = vpop.f32.mrf.mxu0
        %v1424 = vadd.f32 %v1136, %v1423
        %v1425 = vpop.f32.mrf.mxu0
        %1426 = vmatprep.mubr.bf16.mxu0 %v1036
        %1427 = vmatmul.mubr.bf16.gmra.mxu0 %v1035
        %v1428 = vpop.f32.mrf.mxu0
        %v1429 = vadd.f32 %v1136, %v1428
        %v1430 = vpop.f32.mrf.mxu0
        %v1431 = vpop.f32.mrf.mxu0
        %v1432 = vadd.f32 %v1136, %v1431
        %v1433 = vpop.f32.mrf.mxu0
        %1434 = vmatprep.mubr.bf16.mxu0 %v1040
        %1435 = vmatmul.mubr.bf16.gmra.mxu0 %v1039
        %v1436 = vpop.f32.mrf.mxu0
        %v1437 = vadd.f32 %v1136, %v1436
        %v1438 = vpop.f32.mrf.mxu0
        %v1439 = vpop.f32.mrf.mxu0
        %v1440 = vadd.f32 %v1136, %v1439
        %v1441 = vpop.f32.mrf.mxu0
        %1442 = vmatprep.mubr.bf16.mxu0 %v1044
        %1443 = vmatmul.mubr.bf16.gmra.mxu0 %v1043
        %v1444 = vpop.f32.mrf.mxu0
        %v1445 = vadd.f32 %v1136, %v1444
        %v1446 = vpop.f32.mrf.mxu0
        %v1447 = vpop.f32.mrf.mxu0
        %v1448 = vadd.f32 %v1136, %v1447
        %v1449 = vpop.f32.mrf.mxu0
        %1450 = vmatprep.mubr.bf16.mxu0 %v1048
        %1451 = vmatmul.mubr.bf16.gmra.mxu0 %v1047
        %v1452 = vpop.f32.mrf.mxu0
        %v1453 = vadd.f32 %v1136, %v1452
        %v1454 = vpop.f32.mrf.mxu0
        %v1455 = vpop.f32.mrf.mxu0
        %v1456 = vadd.f32 %v1136, %v1455
        %v1457 = vpop.f32.mrf.mxu0
        %1458 = vmatprep.mubr.bf16.mxu0 %v1052
        %1459 = vmatmul.mubr.bf16.gmra.mxu0 %v1051
        %v1460 = vpop.f32.mrf.mxu0
        %v1461 = vadd.f32 %v1136, %v1460
        %v1462 = vpop.f32.mrf.mxu0
        %v1463 = vpop.f32.mrf.mxu0
        %v1464 = vadd.f32 %v1136, %v1463
        %v1465 = vpop.f32.mrf.mxu0
        %1466 = vmatprep.mubr.bf16.mxu0 %v1056
        %1467 = vmatmul.mubr.bf16.gmra.mxu0 %v1055
        %v1468 = vpop.f32.mrf.mxu0
        %v1469 = vadd.f32 %v1136, %v1468
        %v1470 = vpop.f32.mrf.mxu0
        %v1471 = vpop.f32.mrf.mxu0
        %v1472 = vadd.f32 %v1136, %v1471
        %v1473 = vpop.f32.mrf.mxu0
        %1474 = vmatprep.mubr.bf16.mxu0 %v1060
        %1475 = vmatmul.mubr.bf16.gmra.mxu0 %v1059
        %v1476 = vpop.f32.mrf.mxu0
        %v1477 = vadd.f32 %v1136, %v1476
        %v1478 = vpop.f32.mrf.mxu0
        %v1479 = vpop.f32.mrf.mxu0
        %v1480 = vadd.f32 %v1136, %v1479
        %v1481 = vpop.f32.mrf.mxu0
        %1482 = vmatprep.mubr.bf16.mxu0 %v1064
        %1483 = vmatmul.mubr.bf16.gmra.mxu0 %v1063
        %v1484 = vpop.f32.mrf.mxu0
        %v1485 = vadd.f32 %v1136, %v1484
        %v1486 = vpop.f32.mrf.mxu0
        %v1487 = vpop.f32.mrf.mxu0
        %v1488 = vadd.f32 %v1136, %v1487
        %v1489 = vpop.f32.mrf.mxu0
        %1490 = vdwg.mxu0
        %1491 = vmatprep.subr.bf16.mxu0 0
        %1492 = vmatpush1.bf16.msra.mxu0 %v1289
        %1493 = vmatprep.subr.bf16.mxu0 0
        %1494 = vmatpush1.bf16.msra.mxu0 %v1288
        %1495 = vmatprep.subr.bf16.mxu0 0
        %1496 = vmatpush1.bf16.msra.mxu0 %v1287
        %1497 = vmatprep.subr.bf16.mxu0 0
        %1498 = vmatpush1.bf16.msra.mxu0 %v1286
        %1499 = vmatprep.subr.bf16.mxu0 0
        %1500 = vmatpush1.bf16.msra.mxu0 %v1285
        %1501 = vmatprep.subr.bf16.mxu0 0
        %1502 = vmatpush1.bf16.msra.mxu0 %v1284
        %1503 = vmatprep.subr.bf16.mxu0 0
        %1504 = vmatpush1.bf16.msra.mxu0 %v1283
        %1505 = vmatprep.subr.bf16.mxu0 0
        %1506 = vmatpush1.bf16.msra.mxu0 %v1282
        %1507 = vmatprep.subr.bf16.mxu0 0
        %1508 = vmatpush2.bf16.msra.mxu0 %v1297
        %1509 = vmatprep.subr.bf16.mxu0 0
        %1510 = vmatpush2.bf16.msra.mxu0 %v1296
        %1511 = vmatprep.subr.bf16.mxu0 0
        %1512 = vmatpush2.bf16.msra.mxu0 %v1295
        %1513 = vmatprep.subr.bf16.mxu0 0
        %1514 = vmatpush2.bf16.msra.mxu0 %v1294
        %1515 = vmatprep.subr.bf16.mxu0 0
        %1516 = vmatpush2.bf16.msra.mxu0 %v1293
        %1517 = vmatprep.subr.bf16.mxu0 0
        %1518 = vmatpush2.bf16.msra.mxu0 %v1292
        %1519 = vmatprep.subr.bf16.mxu0 0
        %1520 = vmatpush2.bf16.msra.mxu0 %v1291
        %1521 = vmatprep.subr.bf16.mxu0 0
        %1522 = vmatpush2.bf16.msra.mxu0 %v1290
        %1523 = vmatprep.mubr.bf16.mxu0 %v1006
        %1524 = vmatmul.mubr.bf16.gmra.mxu0 %v1005
        %v1525 = vpop.f32.mrf.mxu0
        %v1526 = vadd.f32 %v1365, %v1525
        %v1527 = vpop.f32.mrf.mxu0
        %v1528 = vpop.f32.mrf.mxu0
        %v1529 = vadd.f32 %v1368, %v1528
        %v1530 = vpop.f32.mrf.mxu0
        %1531 = vmatprep.mubr.bf16.mxu0 %v1010
        %1532 = vmatmul.mubr.bf16.gmra.mxu0 %v1009
        %v1533 = vpop.f32.mrf.mxu0
        %v1534 = vadd.f32 %v1373, %v1533
        %v1535 = vpop.f32.mrf.mxu0
        %v1536 = vpop.f32.mrf.mxu0
        %v1537 = vadd.f32 %v1376, %v1536
        %v1538 = vpop.f32.mrf.mxu0
        %1539 = vmatprep.mubr.bf16.mxu0 %v1014
        %1540 = vmatmul.mubr.bf16.gmra.mxu0 %v1013
        %v1541 = vpop.f32.mrf.mxu0
        %v1542 = vadd.f32 %v1381, %v1541
        %v1543 = vpop.f32.mrf.mxu0
        %v1544 = vpop.f32.mrf.mxu0
        %v1545 = vadd.f32 %v1384, %v1544
        %v1546 = vpop.f32.mrf.mxu0
        %1547 = vmatprep.mubr.bf16.mxu0 %v1018
        %1548 = vmatmul.mubr.bf16.gmra.mxu0 %v1017
        %v1549 = vpop.f32.mrf.mxu0
        %v1550 = vadd.f32 %v1389, %v1549
        %v1551 = vpop.f32.mrf.mxu0
        %v1552 = vpop.f32.mrf.mxu0
        %v1553 = vadd.f32 %v1392, %v1552
        %v1554 = vpop.f32.mrf.mxu0
        %1555 = vmatprep.mubr.bf16.mxu0 %v1022
        %1556 = vmatmul.mubr.bf16.gmra.mxu0 %v1021
        %v1557 = vpop.f32.mrf.mxu0
        %v1558 = vadd.f32 %v1397, %v1557
        %v1559 = vpop.f32.mrf.mxu0
        %v1560 = vpop.f32.mrf.mxu0
        %v1561 = vadd.f32 %v1400, %v1560
        %v1562 = vpop.f32.mrf.mxu0
        %1563 = vmatprep.mubr.bf16.mxu0 %v1026
        %1564 = vmatmul.mubr.bf16.gmra.mxu0 %v1025
        %v1565 = vpop.f32.mrf.mxu0
        %v1566 = vadd.f32 %v1405, %v1565
        %v1567 = vpop.f32.mrf.mxu0
        %v1568 = vpop.f32.mrf.mxu0
        %v1569 = vadd.f32 %v1408, %v1568
        %v1570 = vpop.f32.mrf.mxu0
        %1571 = vmatprep.mubr.bf16.mxu0 %v1030
        %1572 = vmatmul.mubr.bf16.gmra.mxu0 %v1029
        %v1573 = vpop.f32.mrf.mxu0
        %v1574 = vadd.f32 %v1413, %v1573
        %v1575 = vpop.f32.mrf.mxu0
        %v1576 = vpop.f32.mrf.mxu0
        %v1577 = vadd.f32 %v1416, %v1576
        %v1578 = vpop.f32.mrf.mxu0
        %1579 = vmatprep.mubr.bf16.mxu0 %v1034
        %1580 = vmatmul.mubr.bf16.gmra.mxu0 %v1033
        %v1581 = vpop.f32.mrf.mxu0
        %v1582 = vadd.f32 %v1421, %v1581
        %v1583 = vpop.f32.mrf.mxu0
        %v1584 = vpop.f32.mrf.mxu0
        %v1585 = vadd.f32 %v1424, %v1584
        %v1586 = vpop.f32.mrf.mxu0
        %1587 = vmatprep.mubr.bf16.mxu0 %v1038
        %1588 = vmatmul.mubr.bf16.gmra.mxu0 %v1037
        %v1589 = vpop.f32.mrf.mxu0
        %v1590 = vadd.f32 %v1429, %v1589
        %v1591 = vpop.f32.mrf.mxu0
        %v1592 = vpop.f32.mrf.mxu0
        %v1593 = vadd.f32 %v1432, %v1592
        %v1594 = vpop.f32.mrf.mxu0
        %1595 = vmatprep.mubr.bf16.mxu0 %v1042
        %1596 = vmatmul.mubr.bf16.gmra.mxu0 %v1041
        %v1597 = vpop.f32.mrf.mxu0
        %v1598 = vadd.f32 %v1437, %v1597
        %v1599 = vpop.f32.mrf.mxu0
        %v1600 = vpop.f32.mrf.mxu0
        %v1601 = vadd.f32 %v1440, %v1600
        %v1602 = vpop.f32.mrf.mxu0
        %1603 = vmatprep.mubr.bf16.mxu0 %v1046
        %1604 = vmatmul.mubr.bf16.gmra.mxu0 %v1045
        %v1605 = vpop.f32.mrf.mxu0
        %v1606 = vadd.f32 %v1445, %v1605
        %v1607 = vpop.f32.mrf.mxu0
        %v1608 = vpop.f32.mrf.mxu0
        %v1609 = vadd.f32 %v1448, %v1608
        %v1610 = vpop.f32.mrf.mxu0
        %1611 = vmatprep.mubr.bf16.mxu0 %v1050
        %1612 = vmatmul.mubr.bf16.gmra.mxu0 %v1049
        %v1613 = vpop.f32.mrf.mxu0
        %v1614 = vadd.f32 %v1453, %v1613
        %v1615 = vpop.f32.mrf.mxu0
        %v1616 = vpop.f32.mrf.mxu0
        %v1617 = vadd.f32 %v1456, %v1616
        %v1618 = vpop.f32.mrf.mxu0
        %1619 = vmatprep.mubr.bf16.mxu0 %v1054
        %1620 = vmatmul.mubr.bf16.gmra.mxu0 %v1053
        %v1621 = vpop.f32.mrf.mxu0
        %v1622 = vadd.f32 %v1461, %v1621
        %v1623 = vpop.f32.mrf.mxu0
        %v1624 = vpop.f32.mrf.mxu0
        %v1625 = vadd.f32 %v1464, %v1624
        %v1626 = vpop.f32.mrf.mxu0
        %1627 = vmatprep.mubr.bf16.mxu0 %v1058
        %1628 = vmatmul.mubr.bf16.gmra.mxu0 %v1057
        %v1629 = vpop.f32.mrf.mxu0
        %v1630 = vadd.f32 %v1469, %v1629
        %v1631 = vpop.f32.mrf.mxu0
        %v1632 = vpop.f32.mrf.mxu0
        %v1633 = vadd.f32 %v1472, %v1632
        %v1634 = vpop.f32.mrf.mxu0
        %1635 = vmatprep.mubr.bf16.mxu0 %v1062
        %1636 = vmatmul.mubr.bf16.gmra.mxu0 %v1061
        %v1637 = vpop.f32.mrf.mxu0
        %v1638 = vadd.f32 %v1477, %v1637
        %v1639 = vpop.f32.mrf.mxu0
        %v1640 = vpop.f32.mrf.mxu0
        %v1641 = vadd.f32 %v1480, %v1640
        %v1642 = vpop.f32.mrf.mxu0
        %1643 = vmatprep.mubr.bf16.mxu0 %v1066
        %1644 = vmatmul.mubr.bf16.gmra.mxu0 %v1065
        %v1645 = vpop.f32.mrf.mxu0
        %v1646 = vadd.f32 %v1485, %v1645
        %v1647 = vpop.f32.mrf.mxu0
        %v1648 = vpop.f32.mrf.mxu0
        %v1649 = vadd.f32 %v1488, %v1648
        %v1650 = vpop.f32.mrf.mxu0
        %1651 = vdwg.mxu0
        %1652 = vst [vmem:[%s218] sm:$0xff] %v1526
        %1653 = vst [vmem:[%s218 + $0x8] sm:$0xff] %v1529
        %1654 = vst [vmem:[%s218 + $0x10] sm:$0xff] %v1534
        %1655 = vst [vmem:[%s218 + $0x18] sm:$0xff] %v1537
        %1656 = vst [vmem:[%s218 + $0x20] sm:$0xff] %v1542
        %1657 = vst [vmem:[%s218 + $0x28] sm:$0xff] %v1545
        %1658 = vst [vmem:[%s218 + $0x30] sm:$0xff] %v1550
        %1659 = vst [vmem:[%s218 + $0x38] sm:$0xff] %v1553
        %1660 = vst [vmem:[%s218 + $0x40] sm:$0xff] %v1558
        %1661 = vst [vmem:[%s218 + $0x48] sm:$0xff] %v1561
        %1662 = vst [vmem:[%s218 + $0x50] sm:$0xff] %v1566
        %1663 = vst [vmem:[%s218 + $0x58] sm:$0xff] %v1569
        %1664 = vst [vmem:[%s218 + $0x60] sm:$0xff] %v1574
        %1665 = vst [vmem:[%s218 + $0x68] sm:$0xff] %v1577
        %1666 = vst [vmem:[%s218 + $0x70] sm:$0xff] %v1582
        %1667 = vst [vmem:[%s218 + $0x78] sm:$0xff] %v1585
        %1668 = vst [vmem:[%s218 + $0x80] sm:$0xff] %v1590
        %1669 = vst [vmem:[%s218 + $0x88] sm:$0xff] %v1593
        %1670 = vst [vmem:[%s218 + $0x90] sm:$0xff] %v1598
        %1671 = vst [vmem:[%s218 + $0x98] sm:$0xff] %v1601
        %1672 = vst [vmem:[%s218 + $0xa0] sm:$0xff] %v1606
        %1673 = vst [vmem:[%s218 + $0xa8] sm:$0xff] %v1609
        %1674 = vst [vmem:[%s218 + $0xb0] sm:$0xff] %v1614
        %1675 = vst [vmem:[%s218 + $0xb8] sm:$0xff] %v1617
        %1676 = vst [vmem:[%s218 + $0xc0] sm:$0xff] %v1622
        %1677 = vst [vmem:[%s218 + $0xc8] sm:$0xff] %v1625
        %1678 = vst [vmem:[%s218 + $0xd0] sm:$0xff] %v1630
        %1679 = vst [vmem:[%s218 + $0xd8] sm:$0xff] %v1633
        %1680 = vst [vmem:[%s218 + $0xe0] sm:$0xff] %v1638
        %1681 = vst [vmem:[%s218 + $0xe8] sm:$0xff] %v1641
        %1682 = vst [vmem:[%s218 + $0xf0] sm:$0xff] %v1646
        %1683 = vst [vmem:[%s218 + $0xf8] sm:$0xff] %v1649
        %s1684 = sand.u32 %s137, 1
        %s1685 = scalar_lea.sflag [#allocation3], %s1684
        %s1686 = sand.u32 %s137, 1
        %s1687 = smul.addr %s1686, 256
        %s1688 = scalar_lea.vmem [#allocation2], %s1687
        // Predicated region
        $region41: #{pallas_feed_forward.1} parent=39 // pred_check
          %p1689 = pneg %p147
        $region42: #{pallas_feed_forward.1} parent=39 // pred_check_branch
          %1691 = sbr.rel (%p1689) target = $region44
        $region43: #{pallas_feed_forward.1} parent=39 // pred_region
          %s1692 = smul.u32 32, %s19
          %s1694 = ssub.s32 4096, 4096
          %1695 = vsyncadd %s1685, %s1694
          %s1696 = smul.addr %s1692, 128
          %s1697 = scalar_lea.hbm %s5, %s1696
          %s1698 = sshll.u32 %s1688, 4
          %s1699 = int_to_ptr.vmem [resolvable:$true] %s1698
          %1704 = dma.vmem_to_hbm [thread:$0]  %s1699, 4096, %s1697, %s1685, 128, 128, 8
        $region44: #{pallas_feed_forward.1} parent=39 // pred_fallthru
          _
      $region40: #{pallas_feed_forward.1} parent=5 // pred_fallthru
        _
      %p1705 = scmp.le.s32.totalorder 2, %s14
      // Predicated region
      $region45: #{pallas_feed_forward.1} parent=5 // pred_check
        %p1706 = pneg %p1705
      $region46: #{pallas_feed_forward.1} parent=5 // pred_check_branch
        %1708 = sbr.rel (%p1706) target = $region48
      $region47: #{pallas_feed_forward.1} parent=5 // pred_region
        %s1709 = ssub.s32 %s14, 2
        // Predicated region
        $region49: #{pallas_feed_forward.1} parent=47 // pred_check
          %p1710 = pneg %p153
        $region50: #{pallas_feed_forward.1} parent=47 // pred_check_branch
          %1712 = sbr.rel (%p1710) target = $region52
        $region51: #{pallas_feed_forward.1} parent=47 // pred_region
          %s1713 = sand.u32 %s138, 1
          %s1714 = scalar_lea.sflag [#allocation3], %s1713
          %s1715 = sand.u32 %s138, 1
          %s1716 = smul.addr %s1715, 256
          %s1717 = scalar_lea.vmem [#allocation2], %s1716
          %1718 = dma.done %s1714, 4096
        $region52: #{pallas_feed_forward.1} parent=47 // pred_fallthru
          _
      $region48: #{pallas_feed_forward.1} parent=5 // pred_fallthru
        _
    $region6: #{pallas_feed_forward.1} parent=1 // loop_footer
      %s18 = sadd.s32 1, %s14
    $region7: #{pallas_feed_forward.1} parent=1 // loop_footer_branch
      %13 = sbr.rel target = $region3
    $region8: #{pallas_feed_forward.1} parent=1 // loop_exit
      _
    %1719 = vsyncpa [#allocation3], 1
    %s1720 = scalar_lea.sflag [#allocation3], 1
    %1721 = vsyncpa %s1720, 1

</llo_original>
